<compile_context>
chip_gen: v7x
topology: tpu7x:2x2x1
jax: 0.10.0
libtpu: 0.0.40
codegen_flags: <defaults>
</compile_context>

<pallas_src>
import jax
import jax.numpy as jnp
from jax.experimental import pallas as pl
from jax.experimental.pallas import tpu as pltpu


def tokenization_kernel(x_ref, w_ref, b2_ref, o_ref):
    Bt, N, C = x_ref.shape
    D2 = b2_ref.shape[-1]
    H = w_ref.shape[-1] - D2

    # Fused projection for all Bt batches at once: (Bt*N, C) @ (C, H+D2).
    # astype(bfloat16) is a no-op if the producer already supplies bf16 x.
    x = x_ref[...].reshape(Bt * N, C).astype(jnp.bfloat16)
    w = w_ref[...]                                        # (C, H+D2), bf16
    proj = jnp.dot(x, w, preferred_element_type=jnp.float32)
    proj = proj.reshape(Bt, N, H + D2)                    # f32

    b2 = b2_ref[...].astype(jnp.float32)                  # (1, D2)

    # Static, tiny loop over the batches in this block (Bt is 1 or 2; kept
    # small on purpose so unrolled softmax temporaries don't pile up in VMEM).
    for bt in range(Bt):
        # b1 omitted: softmax over the token axis is invariant to a per-H
        # constant, so the mlp1 bias cancels exactly.
        a = proj[bt, :, :H]                               # (N, H)  lane-aligned view
        v = proj[bt, :, H:]                               # (N, D2) lane-aligned view

        # Softmax over the token axis (torch dim=1 of B x N x H == axis 0
        # here), kept in f32 on the VPU/EUP.
        m = jnp.max(a, axis=0, keepdims=True)
        e = jnp.exp(a - m)
        s = jnp.sum(e, axis=0, keepdims=True)
        p = e * pl.reciprocal(s, approx=True)             # (N, H)

        # out = p^T @ v + b2  ->  (H, D2); bf16 operands, f32 accumulation.
        # Contraction on dim 0 of both operands; Mosaic fuses the transposed
        # LHS into the MXU feed (no materialized VMEM transpose at these sizes).
        out = jax.lax.dot_general(
            p.astype(jnp.bfloat16),
            v.astype(jnp.bfloat16),
            (((0,), (0,)), ((), ())),
            preferred_element_type=jnp.float32,
        )
        o_ref[bt] = (out + b2).astype(o_ref.dtype)


def tokenization_forward(x, w1, b1, w2, b2, *, batch_tile=None,
                         out_dtype=jnp.bfloat16):
    """x: (B, N, C); w1: (C, H); b1: (H,); w2: (C, D2); b2: (D2,) -> (B, H, D2).

    b1 is accepted for interface parity with the PyTorch module but is a
    mathematical no-op (softmax over the token axis cancels it), so it is never
    shipped to the kernel.
    """
    B, N, C = x.shape
    H = w1.shape[1]
    D2 = w2.shape[1]
    del b1  # cancels under softmax(dim=1); dead work otherwise.

    if batch_tile is None:
        # B < 4: one batch per grid step (2-way TC parallelism on v7x beats MXU
        # fill).  B >= 4: two batches per step -> M = 2*N rows per fused matmul,
        # fewer grid steps on single-TC chips, grid still even for v7x.
        batch_tile = 1 if B < 4 else 2
    assert B % batch_tile == 0, "batch_tile must divide B"
    # Lane-aligned split of the fused projection (free views).  See TODO above
    # for the padding path if this ever fails.
    assert H % 128 == 0 and D2 % 128 == 0, "H and D2 must be multiples of 128"

    # Fuse the two projection weights; feed the MXU in bf16.
    w = jnp.concatenate([w1, w2], axis=1).astype(jnp.bfloat16)   # (C, H+D2)
    b2r = b2.reshape(1, D2).astype(jnp.float32)

    grid = (B // batch_tile,)
    return pl.pallas_call(
        tokenization_kernel,
        out_shape=jax.ShapeDtypeStruct((B, H, D2), out_dtype),
        grid=grid,
        in_specs=[
            pl.BlockSpec((batch_tile, N, C), lambda bi: (bi, 0, 0)),
            # Constant index maps: weights/bias are DMA'd once, not per step.
            pl.BlockSpec((C, H + D2), lambda bi: (0, 0)),
            pl.BlockSpec((1, D2), lambda bi: (0, 0)),
        ],
        out_specs=pl.BlockSpec((batch_tile, H, D2), lambda bi: (bi, 0, 0)),
        compiler_params=pltpu.CompilerParams(dimension_semantics=("parallel",)),
    )(x, w, b2r)


def reference_forward(x, w1, b1, w2, b2):
    out1 = x @ w1 + b1[None]                       # (B, N, H)
    out1 = jax.nn.softmax(out1, axis=1)            # softmax over tokens (dim=1)
    out1 = jnp.swapaxes(out1, 2, 1)                # (B, H, N)
    out2 = x @ w2 + b2[None]                       # (B, N, D2)
    return jnp.matmul(out1, out2)                  # (B, H, D2)


if __name__ == "__main__":
    # Module defaults: input_channel_dim (C) = 64, hidden_dim (H) = 384,
    # mlp2 output = 512 (hardcoded).  N = 128 tokens, B = 2 batches.
    B, N, C = 2, 128, 64
    H, D2 = 384, 512

    key = jax.random.PRNGKey(0)
    kx, kw1, kb1, kw2, kb2 = jax.random.split(key, 5)

    x = jax.random.normal(kx, (B, N, C), dtype=jnp.float32)
    # Deterministic synthetic parameter init (trunc_normal-style scale).
    w1 = 0.02 * jax.random.normal(kw1, (C, H), dtype=jnp.float32)
    b1 = 0.01 * jax.random.normal(kb1, (H,), dtype=jnp.float32)
    w2 = 0.02 * jax.random.normal(kw2, (C, D2), dtype=jnp.float32)
    b2 = 0.01 * jax.random.normal(kb2, (D2,), dtype=jnp.float32)

    ref = reference_forward(x, w1, b1, w2, b2)

    # Preferred production path: producer supplies bf16 x, bf16 output
    # (halves input DMA and output writeback), one batch per grid step.
    x_bf16 = x.astype(jnp.bfloat16)   # stands in for an upstream bf16 producer
    out_p = tokenization_forward(x_bf16, w1, b1, w2, b2, batch_tile=1)
    out_p = jax.block_until_ready(out_p)
    assert out_p.shape == (B, H, D2)
    assert out_p.dtype == jnp.bfloat16
    assert jnp.allclose(out_p.astype(jnp.float32), ref, atol=1e-2, rtol=1e-1)

    # f32-in / f32-out path (tighter parity), batches collapsed into one block
    # (v5e/v6e-style layout, MXU M = B*N = 256).
    out_c = tokenization_forward(x, w1, b1, w2, b2, batch_tile=B,
                                 out_dtype=jnp.float32)
    out_c = jax.block_until_ready(out_c)
    assert out_c.shape == (B, H, D2)
    assert out_c.dtype == jnp.float32
    assert jnp.allclose(out_c, ref, atol=5e-3, rtol=5e-2)

    print("KERNEL_OK")
</pallas_src>

<mosaic_0001>
module attributes {stable_mosaic.version = 11 : i64} {
  func.func @tokenization_kernel(%arg0: i32, %arg1: memref<1x128x64xbf16, #tpu.memory_space<vmem>>, %arg2: memref<64x896xbf16, #tpu.memory_space<vmem>>, %arg3: memref<1x512xf32, #tpu.memory_space<vmem>>, %arg4: memref<1x384x512xbf16, #tpu.memory_space<vmem>>) attributes {dimension_semantics = [#tpu.dimension_semantics<parallel>], iteration_bounds = array<i64: 2>, scalar_prefetch = 0 : i64, scratch_operands = 0 : i64, tpu.core_type = #tpu.core_type<tc>, window_params = [{transform_indices = @transform_0, window_bounds = array<i64: 1, 128, 64>}, {pipeline_mode = #tpu.pipeline_mode<synchronous>, transform_indices = @transform_1, window_bounds = array<i64: 64, 896>}, {pipeline_mode = #tpu.pipeline_mode<synchronous>, transform_indices = @transform_2, window_bounds = array<i64: 1, 512>}, {transform_indices = @transform_3, window_bounds = array<i64: 1, 384, 512>}]} {
    %c0 = arith.constant 0 : index
    %c0_0 = arith.constant 0 : index
    %c0_1 = arith.constant 0 : index
    %0 = vector.load %arg1[%c0, %c0_0, %c0_1] : memref<1x128x64xbf16, #tpu.memory_space<vmem>>, vector<1x128x64xbf16>
    %1 = vector.shape_cast %0 : vector<1x128x64xbf16> to vector<128x64xbf16>
    %c0_2 = arith.constant 0 : index
    %c0_3 = arith.constant 0 : index
    %2 = vector.load %arg2[%c0_2, %c0_3] : memref<64x896xbf16, #tpu.memory_space<vmem>>, vector<64x896xbf16>
    %cst = arith.constant dense<0.000000e+00> : vector<128x896xf32>
    %3 = tpu.matmul %1, %2, %cst {dimension_numbers = #tpu.dot_dimension_numbers<[1], [0], [0], [1], [0, 0, 1, 1], [], []>} : vector<128x64xbf16>, vector<64x896xbf16>, vector<128x896xf32> -> vector<128x896xf32>
    %4 = vector.shape_cast %3 : vector<128x896xf32> to vector<1x128x896xf32>
    %c0_4 = arith.constant 0 : index
    %c0_5 = arith.constant 0 : index
    %5 = vector.load %arg3[%c0_4, %c0_5] : memref<1x512xf32, #tpu.memory_space<vmem>>, vector<1x512xf32>
    %6 = vector.extract_strided_slice %4 {offsets = [0, 0, 0], sizes = [1, 128, 384], strides = [1, 1, 1]} : vector<1x128x896xf32> to vector<1x128x384xf32>
    %7 = vector.shape_cast %6 : vector<1x128x384xf32> to vector<128x384xf32>
    %8 = vector.extract_strided_slice %4 {offsets = [0, 0, 384], sizes = [1, 128, 512], strides = [1, 1, 1]} : vector<1x128x896xf32> to vector<1x128x512xf32>
    %9 = vector.shape_cast %8 : vector<1x128x512xf32> to vector<128x512xf32>
    %cst_6 = arith.constant dense<0xFF800000> : vector<384xf32>
    %10 = vector.multi_reduction <maximumf>, %7, %cst_6 [0] : vector<128x384xf32> to vector<384xf32>
    %11 = vector.shape_cast %10 : vector<384xf32> to vector<1x384xf32>
    %12 = vector.broadcast %11 : vector<1x384xf32> to vector<128x384xf32>
    %13 = arith.subf %7, %12 : vector<128x384xf32>
    %14 = math.exp %13 : vector<128x384xf32>
    %cst_7 = arith.constant dense<0.000000e+00> : vector<384xf32>
    %15 = vector.multi_reduction <add>, %14, %cst_7 [0] : vector<128x384xf32> to vector<384xf32>
    %16 = vector.shape_cast %15 : vector<384xf32> to vector<1x384xf32>
    %17 = tpu.reciprocal %16 {approx = true} : vector<1x384xf32> -> vector<1x384xf32>
    %18 = vector.broadcast %17 : vector<1x384xf32> to vector<128x384xf32>
    %19 = arith.mulf %14, %18 : vector<128x384xf32>
    %20 = arith.truncf %19 : vector<128x384xf32> to vector<128x384xbf16>
    %21 = arith.truncf %9 : vector<128x512xf32> to vector<128x512xbf16>
    %cst_8 = arith.constant dense<0.000000e+00> : vector<384x512xf32>
    %22 = tpu.matmul %20, %21, %cst_8 {dimension_numbers = #tpu.dot_dimension_numbers<[0], [0], [1], [1], [0, 1, 1, 1], [], []>} : vector<128x384xbf16>, vector<128x512xbf16>, vector<384x512xf32> -> vector<384x512xf32>
    %23 = vector.broadcast %5 : vector<1x512xf32> to vector<384x512xf32>
    %24 = arith.addf %22, %23 : vector<384x512xf32>
    %25 = arith.truncf %24 : vector<384x512xf32> to vector<384x512xbf16>
    %c0_9 = arith.constant 0 : index
    %c0_10 = arith.constant 0 : index
    %c0_11 = arith.constant 0 : index
    %26 = vector.load %arg4[%c0_9, %c0_10, %c0_11] : memref<1x384x512xbf16, #tpu.memory_space<vmem>>, vector<1x384x512xbf16>
    %27 = vector.shape_cast %26 : vector<1x384x512xbf16> to vector<384x512xbf16>
    %28 = vector.shape_cast %25 : vector<384x512xbf16> to vector<1x384x512xbf16>
    tpu.vector_store %arg4[%c0_9, %c0_10, %c0_11], %28 {strides = array<i32>} : memref<1x384x512xbf16, #tpu.memory_space<vmem>>, vector<1x384x512xbf16>,
    return
  }
  func.func @transform_0(%arg0: i32) -> (i32, i32, i32) {
    %c0_i32 = arith.constant 0 : i32
    %c0_i32_0 = arith.constant 0 : i32
    %c0_i32_1 = arith.constant 0 : i32
    return %arg0, %c0_i32, %c0_i32_0 : i32, i32, i32
  }
  func.func @transform_1(%arg0: i32) -> (i32, i32) {
    %c0_i32 = arith.constant 0 : i32
    %c0_i32_0 = arith.constant 0 : i32
    %c0_i32_1 = arith.constant 0 : i32
    return %c0_i32, %c0_i32_0 : i32, i32
  }
  func.func @transform_2(%arg0: i32) -> (i32, i32) {
    %c0_i32 = arith.constant 0 : i32
    %c0_i32_0 = arith.constant 0 : i32
    %c0_i32_1 = arith.constant 0 : i32
    return %c0_i32, %c0_i32_0 : i32, i32
  }
  func.func @transform_3(%arg0: i32) -> (i32, i32, i32) {
    %c0_i32 = arith.constant 0 : i32
    %c0_i32_0 = arith.constant 0 : i32
    %c0_i32_1 = arith.constant 0 : i32
    return %arg0, %c0_i32, %c0_i32_0 : i32, i32, i32
  }
}

</mosaic_0001>

<llo_original>
// kernel: tpu_custom_call.1
$region0: #{tpu_custom_call.1}
  #allocation0 [shape = 'u32[]', space=smem, size = 0x4, offset = 0x4, fixed_abs, tag = 'smem constant byte address 0x4 - core index']
  #allocation1 [shape = 'u32[144,128]{1,0:T(1,128)}', space=vmem, size = 0x12000, scoped, tag = 'internal scratch']
  %s0 = inlined_call_operand.vmem [shape: bf16[2,128,64], index: 0, kind: input, shape index: {}]
  %s1 = inlined_call_operand.hbm [shape: bf16[64,896], index: 1, kind: input, shape index: {}]
  %s2 = inlined_call_operand.vmem [shape: f32[1,512], index: 2, kind: input, shape index: {}]
  %s3 = inlined_call_operand.hbm [shape: bf16[2,384,512], index: 3, kind: output, shape index: {}]
  %s4 = sld [smem:[#allocation0]]
  $region49: #{tpu_custom_call.1} parent=0
    _
  %s6 = ssub.s32 1, %s4
  %s7 = scalar_select 0, %s6, %s4
  $region1: #{tpu_custom_call.1} parent=0
    #allocation2 [shape = 'u8[114688]{0}', space=vmem, size = 0x1c000, scoped, tag = 'input window, operand 1, single buffered']
    #allocation3 [shape = 's32[2]{0}', space=sflag, size = 0x8, scoped, tag = 'scoped memory for tpu_custom_call.1']
    #allocation4 [shape = 's32[2]{0}', space=sflag, size = 0x8, scoped, tag = 'scoped memory for tpu_custom_call.1']
    #allocation5 [shape = 'u8[786432]{0}', space=vmem, size = 0xc0000, scoped, tag = 'output window, operand 0']
    %8 = vsyncpa [#allocation3], 0
    %9 = vsyncpa [#allocation4], 0
    %s10 = scalar_lea.sflag [#allocation4], 1
    %11 = vsyncpa %s10, 0
    loop: start=0, step=1, limit=4
    $region2: #{tpu_custom_call.1} parent=1 // loop_pre_header
      _
    $region3: #{tpu_custom_call.1} parent=1 // loop_header
      %s13 = sphi 0, %s17
      %p14 = scmp.ge.s32.totalorder %s13, 4
      %s23 = sphi 0, %s25
      %s26 = sphi 0, %s23
      %s27 = sphi 0, %s26
      %s43 = sphi 0, %s27
      %s47 = sphi 0, %s47
      %s49 = sphi 0, %s47
      %s50 = sphi 0, %s49
      %s64 = sphi 0, %s50
      %s68 = sphi 0, %s68
      %s70 = sphi 0, %s68
      %s71 = sphi 0, %s70
      %s85 = sphi 0, %s71
      %s91 = sphi 0, %s93
      %s94 = sphi 0, %s91
      %s95 = sphi 0, %s94
      %s111 = sphi 0, %s95
    $region4: #{tpu_custom_call.1} parent=1 // loop_header_branch
      %16 = sbr.rel (%p14) target = $region8
    $region5: #{tpu_custom_call.1} parent=1 // loop_body
      %s18 = ssub.s32 %s13, 1
      %s19 = ssub.s32 %s13, 2
      %s20 = sadd.s32 %s13, 1
      %s21 = ssub.s32 %s13, %s20
      %p22 = scmp.eq.s32.totalorder %s21, 0
      %s24 = sadd.s32 %s23, 1
      %s25 = scalar_select %p22, %s23, %s24
      %p28 = pneg %p22
      %p29 = scmp.eq.s32.totalorder %s13, 1
      %p30 = por %p28, %p29
      %p31 = scmp.ne.s32.totalorder %s23, %s26
      %p32 = scmp.eq.s32.totalorder %s13, 0
      %p33 = por %p31, %p32
      %p34 = scmp.ne.s32.totalorder %s23, %s26
      %p35 = scmp.eq.s32.totalorder %s18, 1
      %p36 = por %p34, %p35
      %p37 = scmp.ne.s32.totalorder %s26, %s27
      %p38 = scmp.eq.s32.totalorder %s18, 0
      %p39 = por %p37, %p38
      %p40 = scmp.ne.s32.totalorder %s26, %s27
      %p41 = scmp.eq.s32.totalorder %s19, 1
      %p42 = por %p40, %p41
      %p44 = scmp.ne.s32.totalorder %s27, %s43
      %p45 = scmp.eq.s32.totalorder %s19, 0
      %p46 = por %p44, %p45
      %s48 = sadd.s32 %s47, 1
      %p51 = scmp.eq.s32.totalorder %s13, 1
      %p52 = scmp.ne.s32.totalorder %s47, %s49
      %p53 = scmp.eq.s32.totalorder %s13, 0
      %p54 = por %p52, %p53
      %p55 = scmp.ne.s32.totalorder %s47, %s49
      %p56 = scmp.eq.s32.totalorder %s18, 1
      %p57 = por %p55, %p56
      %p58 = scmp.ne.s32.totalorder %s49, %s50
      %p59 = scmp.eq.s32.totalorder %s18, 0
      %p60 = por %p58, %p59
      %p61 = scmp.ne.s32.totalorder %s49, %s50
      %p62 = scmp.eq.s32.totalorder %s19, 1
      %p63 = por %p61, %p62
      %p65 = scmp.ne.s32.totalorder %s50, %s64
      %p66 = scmp.eq.s32.totalorder %s19, 0
      %p67 = por %p65, %p66
      %s69 = sadd.s32 %s68, 1
      %p72 = scmp.eq.s32.totalorder %s13, 1
      %p73 = scmp.ne.s32.totalorder %s68, %s70
      %p74 = scmp.eq.s32.totalorder %s13, 0
      %p75 = por %p73, %p74
      %p76 = scmp.ne.s32.totalorder %s68, %s70
      %p77 = scmp.eq.s32.totalorder %s18, 1
      %p78 = por %p76, %p77
      %p79 = scmp.ne.s32.totalorder %s70, %s71
      %p80 = scmp.eq.s32.totalorder %s18, 0
      %p81 = por %p79, %p80
      %p82 = scmp.ne.s32.totalorder %s70, %s71
      %p83 = scmp.eq.s32.totalorder %s19, 1
      %p84 = por %p82, %p83
      %p86 = scmp.ne.s32.totalorder %s71, %s85
      %p87 = scmp.eq.s32.totalorder %s19, 0
      %p88 = por %p86, %p87
      %s89 = ssub.s32 %s13, %s20
      %p90 = scmp.eq.s32.totalorder %s89, 0
      %s92 = sadd.s32 %s91, 1
      %s93 = scalar_select %p90, %s91, %s92
      %p96 = pneg %p90
      %p97 = scmp.eq.s32.totalorder %s13, 1
      %p98 = por %p96, %p97
      %p99 = scmp.ne.s32.totalorder %s91, %s94
      %p100 = scmp.eq.s32.totalorder %s13, 0
      %p101 = por %p99, %p100
      %p102 = scmp.ne.s32.totalorder %s91, %s94
      %p103 = scmp.eq.s32.totalorder %s18, 1
      %p104 = por %p102, %p103
      %p105 = scmp.ne.s32.totalorder %s94, %s95
      %p106 = scmp.eq.s32.totalorder %s18, 0
      %p107 = por %p105, %p106
      %p108 = scmp.ne.s32.totalorder %s94, %s95
      %p109 = scmp.eq.s32.totalorder %s19, 1
      %p110 = por %p108, %p109
      %p112 = scmp.ne.s32.totalorder %s95, %s111
      %p113 = scmp.eq.s32.totalorder %s19, 0
      %p114 = por %p112, %p113
      %p115 = scmp.le.s32.totalorder 1, %s13
      %p116 = scmp.lt.s32.totalorder %s13, 3
      %p117 = pnand %p115, %p116
      %p118 = pneg %p117
      // Predicated region
      $region9: #{tpu_custom_call.1} parent=5 // pred_check
        _
      $region10: #{tpu_custom_call.1} parent=5 // pred_check_branch
        %120 = sbr.rel (%p117) target = $region12
      $region11: #{tpu_custom_call.1} parent=5 // pred_region
        %s121 = ssub.s32 %s13, 1
        // Predicated region
        $region13: #{tpu_custom_call.1} parent=11 // pred_check
          %p122 = pneg %p60
        $region14: #{tpu_custom_call.1} parent=11 // pred_check_branch
          %124 = sbr.rel (%p122) target = $region16
        $region15: #{tpu_custom_call.1} parent=11 // pred_region
          %s126 = ssub.s32 3584, 3584
          %127 = vsyncadd [#allocation3], %s126
          %s128 = sshll.u32 [#allocation2], 4
          %s129 = int_to_ptr.vmem [resolvable:$true] %s128
          %134 = dma.hbm_to_vmem [thread:$0]  %s1, 3584, %s129, [#allocation3], 448, 448, 28
        $region16: #{tpu_custom_call.1} parent=11 // pred_fallthru
          _
        // Predicated region
        $region17: #{tpu_custom_call.1} parent=11 // pred_check
          %p135 = pneg %p81
        $region18: #{tpu_custom_call.1} parent=11 // pred_check_branch
          %137 = sbr.rel (%p135) target = $region20
        $region19: #{tpu_custom_call.1} parent=11 // pred_region
          _
        $region20: #{tpu_custom_call.1} parent=11 // pred_fallthru
          _
      $region12: #{tpu_custom_call.1} parent=5 // pred_fallthru
        _
      %p138 = scmp.lt.s32.totalorder %s13, 2
      // Predicated region
      $region21: #{tpu_custom_call.1} parent=5 // pred_check
        %p139 = pneg %p138
      $region22: #{tpu_custom_call.1} parent=5 // pred_check_branch
        %141 = sbr.rel (%p139) target = $region24
      $region23: #{tpu_custom_call.1} parent=5 // pred_region
        // Predicated region
        $region25: #{tpu_custom_call.1} parent=23 // pred_check
          %p142 = pneg %p33
        $region26: #{tpu_custom_call.1} parent=23 // pred_check_branch
          %144 = sbr.rel (%p142) target = $region28
        $region27: #{tpu_custom_call.1} parent=23 // pred_region
          %p145 = scmp.lt.s32.totalorder %s13, 1
          %s146 = scalar_select %p145, %s13, 1
          %s147 = smul.addr %s146, 16
          %s148 = smul.addr %s147, 4
          %s149 = scalar_lea.vmem %s0, %s148
        $region28: #{tpu_custom_call.1} parent=23 // pred_fallthru
          _
      $region24: #{tpu_custom_call.1} parent=5 // pred_fallthru
        _
      %p150 = scmp.le.s32.totalorder 1, %s13
      %p151 = scmp.lt.s32.totalorder %s13, 3
      %p152 = pnand %p150, %p151
      %p153 = pneg %p152
      // Predicated region
      $region29: #{tpu_custom_call.1} parent=5 // pred_check
        _
      $region30: #{tpu_custom_call.1} parent=5 // pred_check_branch
        %155 = sbr.rel (%p152) target = $region32
      $region31: #{tpu_custom_call.1} parent=5 // pred_region
        %s156 = ssub.s32 %s13, 1
        // Predicated region
        $region33: #{tpu_custom_call.1} parent=31 // pred_check
          %p157 = pneg %p60
        $region34: #{tpu_custom_call.1} parent=31 // pred_check_branch
          %159 = sbr.rel (%p157) target = $region36
        $region35: #{tpu_custom_call.1} parent=31 // pred_region
          %160 = dma.done [#allocation3], 3584
        $region36: #{tpu_custom_call.1} parent=31 // pred_fallthru
          _
        %p161 = scmp.lt.s32.totalorder %s18, 1
        %s162 = scalar_select %p161, %s18, 1
        %s163 = smul.addr %s162, 16
        %s164 = smul.addr %s163, 4
        %s165 = scalar_lea.vmem %s0, %s164
        %p166 = pneg %p39
        %p167 = pneg %p36
        %p168 = pneg %p60
        %p169 = pneg %p57
        %p170 = pneg %p81
        %p171 = pneg %p78
        %p172 = pneg %p107
        %p173 = pneg %p104
        %s174 = sand.u32 %s94, 1
        %s175 = scalar_lea.sflag [#allocation4], %s174
        %s176 = sand.u32 %s94, 1
        %s177 = smul.addr %s176, 768
        %s178 = scalar_lea.vmem [#allocation5], %s177
        %p179 = scmp.lt.s32.totalorder %s18, 1
        %s180 = scalar_select %p179, %s18, 1
        %s181 = smul.addr %s180, 16
        %s182 = smul.addr %s181, 4
        %s183 = scalar_lea.vmem %s0, %s182
        %v185 = vld [vmem:[%s183] sm:$0xf]
        %v186 = vld [vmem:[%s183 + $0x4] sm:$0xf]
        %v187 = vld [vmem:[%s183 + $0x8] sm:$0xf]
        %v188 = vld [vmem:[%s183 + $0xc] sm:$0xf]
        %v189 = vld [vmem:[%s183 + $0x10] sm:$0xf]
        %v190 = vld [vmem:[%s183 + $0x14] sm:$0xf]
        %v191 = vld [vmem:[%s183 + $0x18] sm:$0xf]
        %v192 = vld [vmem:[%s183 + $0x1c] sm:$0xf]
        %v193 = vld [vmem:[%s183 + $0x20] sm:$0xf]
        %v194 = vld [vmem:[%s183 + $0x24] sm:$0xf]
        %v195 = vld [vmem:[%s183 + $0x28] sm:$0xf]
        %v196 = vld [vmem:[%s183 + $0x2c] sm:$0xf]
        %v197 = vld [vmem:[%s183 + $0x30] sm:$0xf]
        %v198 = vld [vmem:[%s183 + $0x34] sm:$0xf]
        %v199 = vld [vmem:[%s183 + $0x38] sm:$0xf]
        %v200 = vld [vmem:[%s183 + $0x3c] sm:$0xf]
        %v201 = vld [vmem:[#allocation2] sm:$0xff]
        %v202 = vld [vmem:[#allocation2 + $0x8] sm:$0xff]
        %v203 = vld [vmem:[#allocation2 + $0x10] sm:$0xff]
        %v204 = vld [vmem:[#allocation2 + $0x18] sm:$0xf]
        %v205 = vld [vmem:[#allocation2 + $0x1c] sm:$0xff]
        %v206 = vld [vmem:[#allocation2 + $0x24] sm:$0xff]
        %v207 = vld [vmem:[#allocation2 + $0x2c] sm:$0xff]
        %v208 = vld [vmem:[#allocation2 + $0x34] sm:$0xf]
        %v209 = vld [vmem:[#allocation2 + $0x38] sm:$0xff]
        %v210 = vld [vmem:[#allocation2 + $0x40] sm:$0xff]
        %v211 = vld [vmem:[#allocation2 + $0x48] sm:$0xff]
        %v212 = vld [vmem:[#allocation2 + $0x50] sm:$0xf]
        %v213 = vld [vmem:[#allocation2 + $0x54] sm:$0xff]
        %v214 = vld [vmem:[#allocation2 + $0x5c] sm:$0xff]
        %v215 = vld [vmem:[#allocation2 + $0x64] sm:$0xff]
        %v216 = vld [vmem:[#allocation2 + $0x6c] sm:$0xf]
        %v217 = vld [vmem:[#allocation2 + $0x70] sm:$0xff]
        %v218 = vld [vmem:[#allocation2 + $0x78] sm:$0xff]
        %v219 = vld [vmem:[#allocation2 + $0x80] sm:$0xff]
        %v220 = vld [vmem:[#allocation2 + $0x88] sm:$0xf]
        %v221 = vld [vmem:[#allocation2 + $0x8c] sm:$0xff]
        %v222 = vld [vmem:[#allocation2 + $0x94] sm:$0xff]
        %v223 = vld [vmem:[#allocation2 + $0x9c] sm:$0xff]
        %v224 = vld [vmem:[#allocation2 + $0xa4] sm:$0xf]
        %v225 = vld [vmem:[#allocation2 + $0xa8] sm:$0xff]
        %v226 = vld [vmem:[#allocation2 + $0xb0] sm:$0xff]
        %v227 = vld [vmem:[#allocation2 + $0xb8] sm:$0xff]
        %v228 = vld [vmem:[#allocation2 + $0xc0] sm:$0xf]
        %v229 = vld [vmem:[#allocation2 + $0xc4] sm:$0xff]
        %v230 = vld [vmem:[#allocation2 + $0xcc] sm:$0xff]
        %v231 = vld [vmem:[#allocation2 + $0xd4] sm:$0xff]
        %v232 = vld [vmem:[#allocation2 + $0xdc] sm:$0xf]
        %v249 = vunpack.c.l.b16 %v185
        %v250 = vunpack.c.l.b16 %v186
        %v251 = vunpack.c.l.b16 %v187
        %v252 = vunpack.c.l.b16 %v188
        %v253 = vunpack.c.l.b16 %v189
        %v254 = vunpack.c.l.b16 %v190
        %v255 = vunpack.c.l.b16 %v191
        %v256 = vunpack.c.l.b16 %v192
        %v257 = vunpack.c.l.b16 %v193
        %v258 = vunpack.c.l.b16 %v194
        %v259 = vunpack.c.l.b16 %v195
        %v260 = vunpack.c.l.b16 %v196
        %v261 = vunpack.c.l.b16 %v197
        %v262 = vunpack.c.l.b16 %v198
        %v263 = vunpack.c.l.b16 %v199
        %v264 = vunpack.c.l.b16 %v200
        %v265 = vpack.c.b16 %v250, %v249
        %v266 = vpack.c.b16 %v252, %v251
        %v267 = vpack.c.b16 %v254, %v253
        %v268 = vpack.c.b16 %v256, %v255
        %v269 = vpack.c.b16 %v258, %v257
        %v270 = vpack.c.b16 %v260, %v259
        %v271 = vpack.c.b16 %v262, %v261
        %v272 = vpack.c.b16 %v264, %v263
        %v305 = vunpack.c.l.b16 %v201
        %v306 = vunpack.c.h.b16 %v201
        %v307 = vunpack.c.l.b16 %v202
        %v308 = vunpack.c.h.b16 %v202
        %v309 = vunpack.c.l.b16 %v203
        %v310 = vunpack.c.h.b16 %v203
        %v311 = vunpack.c.l.b16 %v204
        %v312 = vunpack.c.l.b16 %v205
        %v313 = vunpack.c.h.b16 %v205
        %v314 = vunpack.c.l.b16 %v206
        %v315 = vunpack.c.h.b16 %v206
        %v316 = vunpack.c.l.b16 %v207
        %v317 = vunpack.c.h.b16 %v207
        %v318 = vunpack.c.l.b16 %v208
        %v319 = vunpack.c.l.b16 %v209
        %v320 = vunpack.c.h.b16 %v209
        %v321 = vunpack.c.l.b16 %v210
        %v322 = vunpack.c.h.b16 %v210
        %v323 = vunpack.c.l.b16 %v211
        %v324 = vunpack.c.h.b16 %v211
        %v325 = vunpack.c.l.b16 %v212
        %v326 = vunpack.c.l.b16 %v213
        %v327 = vunpack.c.h.b16 %v213
        %v328 = vunpack.c.l.b16 %v214
        %v329 = vunpack.c.h.b16 %v214
        %v330 = vunpack.c.l.b16 %v215
        %v331 = vunpack.c.h.b16 %v215
        %v332 = vunpack.c.l.b16 %v216
        %v333 = vunpack.c.l.b16 %v217
        %v334 = vunpack.c.h.b16 %v217
        %v335 = vunpack.c.l.b16 %v218
        %v336 = vunpack.c.h.b16 %v218
        %v337 = vunpack.c.l.b16 %v219
        %v338 = vunpack.c.h.b16 %v219
        %v339 = vunpack.c.l.b16 %v220
        %v340 = vunpack.c.l.b16 %v221
        %v341 = vunpack.c.h.b16 %v221
        %v342 = vunpack.c.l.b16 %v222
        %v343 = vunpack.c.h.b16 %v222
        %v344 = vunpack.c.l.b16 %v223
        %v345 = vunpack.c.h.b16 %v223
        %v346 = vunpack.c.l.b16 %v224
        %v347 = vunpack.c.l.b16 %v225
        %v348 = vunpack.c.h.b16 %v225
        %v349 = vunpack.c.l.b16 %v226
        %v350 = vunpack.c.h.b16 %v226
        %v351 = vunpack.c.l.b16 %v227
        %v352 = vunpack.c.h.b16 %v227
        %v353 = vunpack.c.l.b16 %v228
        %v354 = vunpack.c.l.b16 %v229
        %v355 = vunpack.c.h.b16 %v229
        %v356 = vunpack.c.l.b16 %v230
        %v357 = vunpack.c.h.b16 %v230
        %v358 = vunpack.c.l.b16 %v231
        %v359 = vunpack.c.h.b16 %v231
        %v360 = vunpack.c.l.b16 %v232
        %v361 = vpack.c.b16 %v312, %v305
        %v362 = vpack.c.b16 %v313, %v306
        %v363 = vpack.c.b16 %v314, %v307
        %v364 = vpack.c.b16 %v315, %v308
        %v365 = vpack.c.b16 %v316, %v309
        %v366 = vpack.c.b16 %v317, %v310
        %v367 = vpack.c.b16 %v318, %v311
        %v368 = vpack.c.b16 %v326, %v319
        %v369 = vpack.c.b16 %v327, %v320
        %v370 = vpack.c.b16 %v328, %v321
        %v371 = vpack.c.b16 %v329, %v322
        %v372 = vpack.c.b16 %v330, %v323
        %v373 = vpack.c.b16 %v331, %v324
        %v374 = vpack.c.b16 %v332, %v325
        %v375 = vpack.c.b16 %v340, %v333
        %v376 = vpack.c.b16 %v341, %v334
        %v377 = vpack.c.b16 %v342, %v335
        %v378 = vpack.c.b16 %v343, %v336
        %v379 = vpack.c.b16 %v344, %v337
        %v380 = vpack.c.b16 %v345, %v338
        %v381 = vpack.c.b16 %v346, %v339
        %v382 = vpack.c.b16 %v354, %v347
        %v383 = vpack.c.b16 %v355, %v348
        %v384 = vpack.c.b16 %v356, %v349
        %v385 = vpack.c.b16 %v357, %v350
        %v386 = vpack.c.b16 %v358, %v351
        %v387 = vpack.c.b16 %v359, %v352
        %v388 = vpack.c.b16 %v360, %v353
        %vm417 = vcmask 523264
        %v419 = vsel %vm417, %v265, 0
        %v422 = vsel %vm417, %v266, 0
        %v425 = vsel %vm417, %v267, 0
        %v428 = vsel %vm417, %v268, 0
        %v431 = vsel %vm417, %v269, 0
        %v434 = vsel %vm417, %v270, 0
        %v437 = vsel %vm417, %v271, 0
        %v440 = vsel %vm417, %v272, 0
        %442 = vmatprep.subr.bf16.mxu0 %v362
        %443 = vmatpush1.bf16.msra.mxu0 %v361
        %444 = vmatprep.subr.bf16.mxu0 %v369
        %445 = vmatpush1.bf16.msra.mxu0 %v368
        %446 = vmatprep.subr.bf16.mxu0 %v376
        %447 = vmatpush1.bf16.msra.mxu0 %v375
        %448 = vmatprep.subr.bf16.mxu0 %v383
        %449 = vmatpush1.bf16.msra.mxu0 %v382
        %450 = vmatprep.subr.bf16.mxu0 0
        %451 = vmatpush1.bf16.msra.mxu0 0
        %452 = vmatprep.subr.bf16.mxu0 0
        %453 = vmatpush1.bf16.msra.mxu0 0
        %454 = vmatprep.subr.bf16.mxu0 0
        %455 = vmatpush1.bf16.msra.mxu0 0
        %456 = vmatprep.subr.bf16.mxu0 0
        %457 = vmatpush1.bf16.msra.mxu0 0
        %458 = vmatprep.subr.bf16.mxu0 0
        %459 = vmatpush1.bf16.msra.mxu0 0
        %460 = vmatprep.subr.bf16.mxu0 0
        %461 = vmatpush1.bf16.msra.mxu0 0
        %462 = vmatprep.subr.bf16.mxu0 0
        %463 = vmatpush1.bf16.msra.mxu0 0
        %464 = vmatprep.subr.bf16.mxu0 0
        %465 = vmatpush1.bf16.msra.mxu0 0
        %466 = vmatprep.subr.bf16.mxu0 0
        %467 = vmatpush1.bf16.msra.mxu0 0
        %468 = vmatprep.subr.bf16.mxu0 0
        %469 = vmatpush1.bf16.msra.mxu0 0
        %470 = vmatprep.subr.bf16.mxu0 0
        %471 = vmatpush1.bf16.msra.mxu0 0
        %472 = vmatprep.subr.bf16.mxu0 0
        %473 = vmatpush1.bf16.msra.mxu0 0
        %474 = vmatprep.mubr.bf16.mxu0 0
        %475 = vmatmul.mubr.bf16.gmra.mrb[0].mxu0 %v419
        %v476 = vpop.f32.mrb[0].mxu0
        %v477 = vadd.f32 0.0, %v476
        %v478 = vpop.f32.mrb[0].mxu0
        %v479 = vadd.f32 0.0, %v478
        %v480 = vpop.f32.mrb[0].mxu0
        %v481 = vadd.f32 0.0, %v480
        %v482 = vpop.f32.mrb[0].mxu0
        %v483 = vadd.f32 0.0, %v482
        %484 = vmatprep.mubr.bf16.mxu0 0
        %485 = vmatmul.mubr.bf16.gmra.mrb[0].mxu0 %v422
        %v486 = vpop.f32.mrb[0].mxu0
        %v487 = vadd.f32 0.0, %v486
        %v488 = vpop.f32.mrb[0].mxu0
        %v489 = vadd.f32 0.0, %v488
        %v490 = vpop.f32.mrb[0].mxu0
        %v491 = vadd.f32 0.0, %v490
        %v492 = vpop.f32.mrb[0].mxu0
        %v493 = vadd.f32 0.0, %v492
        %494 = vmatprep.mubr.bf16.mxu0 0
        %495 = vmatmul.mubr.bf16.gmra.mrb[0].mxu0 %v425
        %v496 = vpop.f32.mrb[0].mxu0
        %v497 = vadd.f32 0.0, %v496
        %v498 = vpop.f32.mrb[0].mxu0
        %v499 = vadd.f32 0.0, %v498
        %v500 = vpop.f32.mrb[0].mxu0
        %v501 = vadd.f32 0.0, %v500
        %v502 = vpop.f32.mrb[0].mxu0
        %v503 = vadd.f32 0.0, %v502
        %504 = vmatprep.mubr.bf16.mxu0 0
        %505 = vmatmul.mubr.bf16.gmra.mrb[0].mxu0 %v428
        %v506 = vpop.f32.mrb[0].mxu0
        %v507 = vadd.f32 0.0, %v506
        %v508 = vpop.f32.mrb[0].mxu0
        %v509 = vadd.f32 0.0, %v508
        %v510 = vpop.f32.mrb[0].mxu0
        %v511 = vadd.f32 0.0, %v510
        %v512 = vpop.f32.mrb[0].mxu0
        %v513 = vadd.f32 0.0, %v512
        %514 = vmatprep.mubr.bf16.mxu0 0
        %515 = vmatmul.mubr.bf16.gmra.mrb[0].mxu0 %v431
        %v516 = vpop.f32.mrb[0].mxu0
        %v517 = vadd.f32 0.0, %v516
        %v518 = vpop.f32.mrb[0].mxu0
        %v519 = vadd.f32 0.0, %v518
        %v520 = vpop.f32.mrb[0].mxu0
        %v521 = vadd.f32 0.0, %v520
        %v522 = vpop.f32.mrb[0].mxu0
        %v523 = vadd.f32 0.0, %v522
        %524 = vmatprep.mubr.bf16.mxu0 0
        %525 = vmatmul.mubr.bf16.gmra.mrb[0].mxu0 %v434
        %v526 = vpop.f32.mrb[0].mxu0
        %v527 = vadd.f32 0.0, %v526
        %v528 = vpop.f32.mrb[0].mxu0
        %v529 = vadd.f32 0.0, %v528
        %v530 = vpop.f32.mrb[0].mxu0
        %v531 = vadd.f32 0.0, %v530
        %v532 = vpop.f32.mrb[0].mxu0
        %v533 = vadd.f32 0.0, %v532
        %534 = vmatprep.mubr.bf16.mxu0 0
        %535 = vmatmul.mubr.bf16.gmra.mrb[0].mxu0 %v437
        %v536 = vpop.f32.mrb[0].mxu0
        %v537 = vadd.f32 0.0, %v536
        %v538 = vpop.f32.mrb[0].mxu0
        %v539 = vadd.f32 0.0, %v538
        %v540 = vpop.f32.mrb[0].mxu0
        %v541 = vadd.f32 0.0, %v540
        %v542 = vpop.f32.mrb[0].mxu0
        %v543 = vadd.f32 0.0, %v542
        %544 = vmatprep.mubr.bf16.mxu0 0
        %545 = vmatmul.mubr.bf16.gmra.mrb[0].mxu0 %v440
        %v546 = vpop.f32.mrb[0].mxu0
        %v547 = vadd.f32 0.0, %v546
        %v548 = vpop.f32.mrb[0].mxu0
        %v549 = vadd.f32 0.0, %v548
        %v550 = vpop.f32.mrb[0].mxu0
        %v551 = vadd.f32 0.0, %v550
        %v552 = vpop.f32.mrb[0].mxu0
        %v553 = vadd.f32 0.0, %v552
        %554 = vdwg.mxu0
        %555 = vmatprep.subr.bf16.mxu0 %v364
        %556 = vmatpush1.bf16.msra.mxu0 %v363
        %557 = vmatprep.subr.bf16.mxu0 %v371
        %558 = vmatpush1.bf16.msra.mxu0 %v370
        %559 = vmatprep.subr.bf16.mxu0 %v378
        %560 = vmatpush1.bf16.msra.mxu0 %v377
        %561 = vmatprep.subr.bf16.mxu0 %v385
        %562 = vmatpush1.bf16.msra.mxu0 %v384
        %563 = vmatprep.subr.bf16.mxu0 0
        %564 = vmatpush1.bf16.msra.mxu0 0
        %565 = vmatprep.subr.bf16.mxu0 0
        %566 = vmatpush1.bf16.msra.mxu0 0
        %567 = vmatprep.subr.bf16.mxu0 0
        %568 = vmatpush1.bf16.msra.mxu0 0
        %569 = vmatprep.subr.bf16.mxu0 0
        %570 = vmatpush1.bf16.msra.mxu0 0
        %571 = vmatprep.subr.bf16.mxu0 0
        %572 = vmatpush1.bf16.msra.mxu0 0
        %573 = vmatprep.subr.bf16.mxu0 0
        %574 = vmatpush1.bf16.msra.mxu0 0
        %575 = vmatprep.subr.bf16.mxu0 0
        %576 = vmatpush1.bf16.msra.mxu0 0
        %577 = vmatprep.subr.bf16.mxu0 0
        %578 = vmatpush1.bf16.msra.mxu0 0
        %579 = vmatprep.subr.bf16.mxu0 0
        %580 = vmatpush1.bf16.msra.mxu0 0
        %581 = vmatprep.subr.bf16.mxu0 0
        %582 = vmatpush1.bf16.msra.mxu0 0
        %583 = vmatprep.subr.bf16.mxu0 0
        %584 = vmatpush1.bf16.msra.mxu0 0
        %585 = vmatprep.subr.bf16.mxu0 0
        %586 = vmatpush1.bf16.msra.mxu0 0
        %587 = vmatprep.mubr.bf16.mxu0 0
        %588 = vmatmul.mubr.bf16.gmra.mrb[0].mxu0 %v419
        %v589 = vpop.f32.mrb[0].mxu0
        %v590 = vadd.f32 0.0, %v589
        %v591 = vpop.f32.mrb[0].mxu0
        %v592 = vadd.f32 0.0, %v591
        %v593 = vpop.f32.mrb[0].mxu0
        %v594 = vadd.f32 0.0, %v593
        %v595 = vpop.f32.mrb[0].mxu0
        %v596 = vadd.f32 0.0, %v595
        %597 = vmatprep.mubr.bf16.mxu0 0
        %598 = vmatmul.mubr.bf16.gmra.mrb[0].mxu0 %v422
        %v599 = vpop.f32.mrb[0].mxu0
        %v600 = vadd.f32 0.0, %v599
        %v601 = vpop.f32.mrb[0].mxu0
        %v602 = vadd.f32 0.0, %v601
        %v603 = vpop.f32.mrb[0].mxu0
        %v604 = vadd.f32 0.0, %v603
        %v605 = vpop.f32.mrb[0].mxu0
        %v606 = vadd.f32 0.0, %v605
        %607 = vmatprep.mubr.bf16.mxu0 0
        %608 = vmatmul.mubr.bf16.gmra.mrb[0].mxu0 %v425
        %v609 = vpop.f32.mrb[0].mxu0
        %v610 = vadd.f32 0.0, %v609
        %v611 = vpop.f32.mrb[0].mxu0
        %v612 = vadd.f32 0.0, %v611
        %v613 = vpop.f32.mrb[0].mxu0
        %v614 = vadd.f32 0.0, %v613
        %v615 = vpop.f32.mrb[0].mxu0
        %v616 = vadd.f32 0.0, %v615
        %617 = vmatprep.mubr.bf16.mxu0 0
        %618 = vmatmul.mubr.bf16.gmra.mrb[0].mxu0 %v428
        %v619 = vpop.f32.mrb[0].mxu0
        %v620 = vadd.f32 0.0, %v619
        %v621 = vpop.f32.mrb[0].mxu0
        %v622 = vadd.f32 0.0, %v621
        %v623 = vpop.f32.mrb[0].mxu0
        %v624 = vadd.f32 0.0, %v623
        %v625 = vpop.f32.mrb[0].mxu0
        %v626 = vadd.f32 0.0, %v625
        %627 = vmatprep.mubr.bf16.mxu0 0
        %628 = vmatmul.mubr.bf16.gmra.mrb[0].mxu0 %v431
        %v629 = vpop.f32.mrb[0].mxu0
        %v630 = vadd.f32 0.0, %v629
        %v631 = vpop.f32.mrb[0].mxu0
        %v632 = vadd.f32 0.0, %v631
        %v633 = vpop.f32.mrb[0].mxu0
        %v634 = vadd.f32 0.0, %v633
        %v635 = vpop.f32.mrb[0].mxu0
        %v636 = vadd.f32 0.0, %v635
        %637 = vmatprep.mubr.bf16.mxu0 0
        %638 = vmatmul.mubr.bf16.gmra.mrb[0].mxu0 %v434
        %v639 = vpop.f32.mrb[0].mxu0
        %v640 = vadd.f32 0.0, %v639
        %v641 = vpop.f32.mrb[0].mxu0
        %v642 = vadd.f32 0.0, %v641
        %v643 = vpop.f32.mrb[0].mxu0
        %v644 = vadd.f32 0.0, %v643
        %v645 = vpop.f32.mrb[0].mxu0
        %v646 = vadd.f32 0.0, %v645
        %647 = vmatprep.mubr.bf16.mxu0 0
        %648 = vmatmul.mubr.bf16.gmra.mrb[0].mxu0 %v437
        %v649 = vpop.f32.mrb[0].mxu0
        %v650 = vadd.f32 0.0, %v649
        %v651 = vpop.f32.mrb[0].mxu0
        %v652 = vadd.f32 0.0, %v651
        %v653 = vpop.f32.mrb[0].mxu0
        %v654 = vadd.f32 0.0, %v653
        %v655 = vpop.f32.mrb[0].mxu0
        %v656 = vadd.f32 0.0, %v655
        %657 = vmatprep.mubr.bf16.mxu0 0
        %658 = vmatmul.mubr.bf16.gmra.mrb[0].mxu0 %v440
        %v659 = vpop.f32.mrb[0].mxu0
        %v660 = vadd.f32 0.0, %v659
        %v661 = vpop.f32.mrb[0].mxu0
        %v662 = vadd.f32 0.0, %v661
        %v663 = vpop.f32.mrb[0].mxu0
        %v664 = vadd.f32 0.0, %v663
        %v665 = vpop.f32.mrb[0].mxu0
        %v666 = vadd.f32 0.0, %v665
        %667 = vdwg.mxu0
        %668 = vmatprep.subr.bf16.mxu0 %v366
        %669 = vmatpush1.bf16.msra.mxu0 %v365
        %670 = vmatprep.subr.bf16.mxu0 %v373
        %671 = vmatpush1.bf16.msra.mxu0 %v372
        %672 = vmatprep.subr.bf16.mxu0 %v380
        %673 = vmatpush1.bf16.msra.mxu0 %v379
        %674 = vmatprep.subr.bf16.mxu0 %v387
        %675 = vmatpush1.bf16.msra.mxu0 %v386
        %676 = vmatprep.subr.bf16.mxu0 0
        %677 = vmatpush1.bf16.msra.mxu0 0
        %678 = vmatprep.subr.bf16.mxu0 0
        %679 = vmatpush1.bf16.msra.mxu0 0
        %680 = vmatprep.subr.bf16.mxu0 0
        %681 = vmatpush1.bf16.msra.mxu0 0
        %682 = vmatprep.subr.bf16.mxu0 0
        %683 = vmatpush1.bf16.msra.mxu0 0
        %684 = vmatprep.subr.bf16.mxu0 0
        %685 = vmatpush1.bf16.msra.mxu0 0
        %686 = vmatprep.subr.bf16.mxu0 0
        %687 = vmatpush1.bf16.msra.mxu0 0
        %688 = vmatprep.subr.bf16.mxu0 0
        %689 = vmatpush1.bf16.msra.mxu0 0
        %690 = vmatprep.subr.bf16.mxu0 0
        %691 = vmatpush1.bf16.msra.mxu0 0
        %692 = vmatprep.subr.bf16.mxu0 0
        %693 = vmatpush1.bf16.msra.mxu0 0
        %694 = vmatprep.subr.bf16.mxu0 0
        %695 = vmatpush1.bf16.msra.mxu0 0
        %696 = vmatprep.subr.bf16.mxu0 0
        %697 = vmatpush1.bf16.msra.mxu0 0
        %698 = vmatprep.subr.bf16.mxu0 0
        %699 = vmatpush1.bf16.msra.mxu0 0
        %700 = vmatprep.mubr.bf16.mxu0 0
        %701 = vmatmul.mubr.bf16.gmra.mrb[0].mxu0 %v419
        %v702 = vpop.f32.mrb[0].mxu0
        %v703 = vadd.f32 0.0, %v702
        %v704 = vpop.f32.mrb[0].mxu0
        %v705 = vadd.f32 0.0, %v704
        %v706 = vpop.f32.mrb[0].mxu0
        %v707 = vadd.f32 0.0, %v706
        %v708 = vpop.f32.mrb[0].mxu0
        %v709 = vadd.f32 0.0, %v708
        %710 = vmatprep.mubr.bf16.mxu0 0
        %711 = vmatmul.mubr.bf16.gmra.mrb[0].mxu0 %v422
        %v712 = vpop.f32.mrb[0].mxu0
        %v713 = vadd.f32 0.0, %v712
        %v714 = vpop.f32.mrb[0].mxu0
        %v715 = vadd.f32 0.0, %v714
        %v716 = vpop.f32.mrb[0].mxu0
        %v717 = vadd.f32 0.0, %v716
        %v718 = vpop.f32.mrb[0].mxu0
        %v719 = vadd.f32 0.0, %v718
        %720 = vmatprep.mubr.bf16.mxu0 0
        %721 = vmatmul.mubr.bf16.gmra.mrb[0].mxu0 %v425
        %v722 = vpop.f32.mrb[0].mxu0
        %v723 = vadd.f32 0.0, %v722
        %v724 = vpop.f32.mrb[0].mxu0
        %v725 = vadd.f32 0.0, %v724
        %v726 = vpop.f32.mrb[0].mxu0
        %v727 = vadd.f32 0.0, %v726
        %v728 = vpop.f32.mrb[0].mxu0
        %v729 = vadd.f32 0.0, %v728
        %730 = vmatprep.mubr.bf16.mxu0 0
        %731 = vmatmul.mubr.bf16.gmra.mrb[0].mxu0 %v428
        %v732 = vpop.f32.mrb[0].mxu0
        %v733 = vadd.f32 0.0, %v732
        %v734 = vpop.f32.mrb[0].mxu0
        %v735 = vadd.f32 0.0, %v734
        %v736 = vpop.f32.mrb[0].mxu0
        %v737 = vadd.f32 0.0, %v736
        %v738 = vpop.f32.mrb[0].mxu0
        %v739 = vadd.f32 0.0, %v738
        %740 = vmatprep.mubr.bf16.mxu0 0
        %741 = vmatmul.mubr.bf16.gmra.mrb[0].mxu0 %v431
        %v742 = vpop.f32.mrb[0].mxu0
        %v743 = vadd.f32 0.0, %v742
        %v744 = vpop.f32.mrb[0].mxu0
        %v745 = vadd.f32 0.0, %v744
        %v746 = vpop.f32.mrb[0].mxu0
        %v747 = vadd.f32 0.0, %v746
        %v748 = vpop.f32.mrb[0].mxu0
        %v749 = vadd.f32 0.0, %v748
        %750 = vmatprep.mubr.bf16.mxu0 0
        %751 = vmatmul.mubr.bf16.gmra.mrb[0].mxu0 %v434
        %v752 = vpop.f32.mrb[0].mxu0
        %v753 = vadd.f32 0.0, %v752
        %v754 = vpop.f32.mrb[0].mxu0
        %v755 = vadd.f32 0.0, %v754
        %v756 = vpop.f32.mrb[0].mxu0
        %v757 = vadd.f32 0.0, %v756
        %v758 = vpop.f32.mrb[0].mxu0
        %v759 = vadd.f32 0.0, %v758
        %760 = vmatprep.mubr.bf16.mxu0 0
        %761 = vmatmul.mubr.bf16.gmra.mrb[0].mxu0 %v437
        %v762 = vpop.f32.mrb[0].mxu0
        %v763 = vadd.f32 0.0, %v762
        %v764 = vpop.f32.mrb[0].mxu0
        %v765 = vadd.f32 0.0, %v764
        %v766 = vpop.f32.mrb[0].mxu0
        %v767 = vadd.f32 0.0, %v766
        %v768 = vpop.f32.mrb[0].mxu0
        %v769 = vadd.f32 0.0, %v768
        %770 = vmatprep.mubr.bf16.mxu0 0
        %771 = vmatmul.mubr.bf16.gmra.mrb[0].mxu0 %v440
        %v772 = vpop.f32.mrb[0].mxu0
        %v773 = vadd.f32 0.0, %v772
        %v774 = vpop.f32.mrb[0].mxu0
        %v775 = vadd.f32 0.0, %v774
        %v776 = vpop.f32.mrb[0].mxu0
        %v777 = vadd.f32 0.0, %v776
        %v778 = vpop.f32.mrb[0].mxu0
        %v779 = vadd.f32 0.0, %v778
        %780 = vdwg.mxu0
        %781 = vmatprep.subr.bf16.mxu0 0
        %782 = vmatpush1.bf16.msra.mxu0 %v367
        %783 = vmatprep.subr.bf16.mxu0 0
        %784 = vmatpush1.bf16.msra.mxu0 %v374
        %785 = vmatprep.subr.bf16.mxu0 0
        %786 = vmatpush1.bf16.msra.mxu0 %v381
        %787 = vmatprep.subr.bf16.mxu0 0
        %788 = vmatpush1.bf16.msra.mxu0 %v388
        %789 = vmatprep.subr.bf16.mxu0 0
        %790 = vmatpush1.bf16.msra.mxu0 0
        %791 = vmatprep.subr.bf16.mxu0 0
        %792 = vmatpush1.bf16.msra.mxu0 0
        %793 = vmatprep.subr.bf16.mxu0 0
        %794 = vmatpush1.bf16.msra.mxu0 0
        %795 = vmatprep.subr.bf16.mxu0 0
        %796 = vmatpush1.bf16.msra.mxu0 0
        %797 = vmatprep.subr.bf16.mxu0 0
        %798 = vmatpush1.bf16.msra.mxu0 0
        %799 = vmatprep.subr.bf16.mxu0 0
        %800 = vmatpush1.bf16.msra.mxu0 0
        %801 = vmatprep.subr.bf16.mxu0 0
        %802 = vmatpush1.bf16.msra.mxu0 0
        %803 = vmatprep.subr.bf16.mxu0 0
        %804 = vmatpush1.bf16.msra.mxu0 0
        %805 = vmatprep.subr.bf16.mxu0 0
        %806 = vmatpush1.bf16.msra.mxu0 0
        %807 = vmatprep.subr.bf16.mxu0 0
        %808 = vmatpush1.bf16.msra.mxu0 0
        %809 = vmatprep.subr.bf16.mxu0 0
        %810 = vmatpush1.bf16.msra.mxu0 0
        %811 = vmatprep.subr.bf16.mxu0 0
        %812 = vmatpush1.bf16.msra.mxu0 0
        %813 = vmatprep.mubr.bf16.mxu0 0
        %814 = vmatmul.mubr.bf16.gmra.mrb[0].mxu0 %v419
        %v815 = vpop.f32.mrb[0].mxu0
        %v816 = vadd.f32 0.0, %v815
        %v817 = vpop.f32.mrb[0].mxu0
        %v818 = vpop.f32.mrb[0].mxu0
        %v819 = vadd.f32 0.0, %v818
        %v820 = vpop.f32.mrb[0].mxu0
        %821 = vmatprep.mubr.bf16.mxu0 0
        %822 = vmatmul.mubr.bf16.gmra.mrb[0].mxu0 %v422
        %v823 = vpop.f32.mrb[0].mxu0
        %v824 = vadd.f32 0.0, %v823
        %v825 = vpop.f32.mrb[0].mxu0
        %v826 = vpop.f32.mrb[0].mxu0
        %v827 = vadd.f32 0.0, %v826
        %v828 = vpop.f32.mrb[0].mxu0
        %829 = vmatprep.mubr.bf16.mxu0 0
        %830 = vmatmul.mubr.bf16.gmra.mrb[0].mxu0 %v425
        %v831 = vpop.f32.mrb[0].mxu0
        %v832 = vadd.f32 0.0, %v831
        %v833 = vpop.f32.mrb[0].mxu0
        %v834 = vpop.f32.mrb[0].mxu0
        %v835 = vadd.f32 0.0, %v834
        %v836 = vpop.f32.mrb[0].mxu0
        %837 = vmatprep.mubr.bf16.mxu0 0
        %838 = vmatmul.mubr.bf16.gmra.mrb[0].mxu0 %v428
        %v839 = vpop.f32.mrb[0].mxu0
        %v840 = vadd.f32 0.0, %v839
        %v841 = vpop.f32.mrb[0].mxu0
        %v842 = vpop.f32.mrb[0].mxu0
        %v843 = vadd.f32 0.0, %v842
        %v844 = vpop.f32.mrb[0].mxu0
        %845 = vmatprep.mubr.bf16.mxu0 0
        %846 = vmatmul.mubr.bf16.gmra.mrb[0].mxu0 %v431
        %v847 = vpop.f32.mrb[0].mxu0
        %v848 = vadd.f32 0.0, %v847
        %v849 = vpop.f32.mrb[0].mxu0
        %v850 = vpop.f32.mrb[0].mxu0
        %v851 = vadd.f32 0.0, %v850
        %v852 = vpop.f32.mrb[0].mxu0
        %853 = vmatprep.mubr.bf16.mxu0 0
        %854 = vmatmul.mubr.bf16.gmra.mrb[0].mxu0 %v434
        %v855 = vpop.f32.mrb[0].mxu0
        %v856 = vadd.f32 0.0, %v855
        %v857 = vpop.f32.mrb[0].mxu0
        %v858 = vpop.f32.mrb[0].mxu0
        %v859 = vadd.f32 0.0, %v858
        %v860 = vpop.f32.mrb[0].mxu0
        %861 = vmatprep.mubr.bf16.mxu0 0
        %862 = vmatmul.mubr.bf16.gmra.mrb[0].mxu0 %v437
        %v863 = vpop.f32.mrb[0].mxu0
        %v864 = vadd.f32 0.0, %v863
        %v865 = vpop.f32.mrb[0].mxu0
        %v866 = vpop.f32.mrb[0].mxu0
        %v867 = vadd.f32 0.0, %v866
        %v868 = vpop.f32.mrb[0].mxu0
        %869 = vmatprep.mubr.bf16.mxu0 0
        %870 = vmatmul.mubr.bf16.gmra.mrb[0].mxu0 %v440
        %v871 = vpop.f32.mrb[0].mxu0
        %v872 = vadd.f32 0.0, %v871
        %v873 = vpop.f32.mrb[0].mxu0
        %v874 = vpop.f32.mrb[0].mxu0
        %v875 = vadd.f32 0.0, %v874
        %v876 = vpop.f32.mrb[0].mxu0
        %877 = vdwg.mxu0
        %v878 = vld [vmem:[%s2] sm:$0xf]
        %v879 = vmax.f32 %v477, %v487
        %v880 = vmax.f32 %v481, %v491
        %v881 = vmax.f32 %v879, %v497
        %v882 = vmax.f32 %v880, %v501
        %v883 = vmax.f32 %v881, %v507
        %v884 = vmax.f32 %v882, %v511
        %v885 = vmax.f32 %v883, %v517
        %v886 = vmax.f32 %v884, %v521
        %v887 = vmax.f32 %v885, %v527
        %v888 = vmax.f32 %v886, %v531
        %v889 = vmax.f32 %v887, %v537
        %v890 = vmax.f32 %v888, %v541
        %v891 = vmax.f32 %v889, %v547
        %v892 = vmax.f32 %v890, %v551
        %v893 = vmax.f32 %v891, %v892
        %v894 = vrot.slane %v893, 4
        %v895 = vmax.f32 %v893, %v894
        %v896 = vrot.slane %v895, 2
        %v897 = vmax.f32 %v895, %v896
        %v898 = vrot.slane %v897, 1
        %v899 = vmax.f32 %v897, %v898
        %v900 = vmax.f32 %v479, %v489
        %v901 = vmax.f32 %v483, %v493
        %v902 = vmax.f32 %v900, %v499
        %v903 = vmax.f32 %v901, %v503
        %v904 = vmax.f32 %v902, %v509
        %v905 = vmax.f32 %v903, %v513
        %v906 = vmax.f32 %v904, %v519
        %v907 = vmax.f32 %v905, %v523
        %v908 = vmax.f32 %v906, %v529
        %v909 = vmax.f32 %v907, %v533
        %v910 = vmax.f32 %v908, %v539
        %v911 = vmax.f32 %v909, %v543
        %v912 = vmax.f32 %v910, %v549
        %v913 = vmax.f32 %v911, %v553
        %v914 = vmax.f32 %v912, %v913
        %v915 = vrot.slane %v914, 4
        %v916 = vmax.f32 %v914, %v915
        %v917 = vrot.slane %v916, 2
        %v918 = vmax.f32 %v916, %v917
        %v919 = vrot.slane %v918, 1
        %v920 = vmax.f32 %v918, %v919
        %v921 = vmax.f32 %v590, %v600
        %v922 = vmax.f32 %v594, %v604
        %v923 = vmax.f32 %v921, %v610
        %v924 = vmax.f32 %v922, %v614
        %v925 = vmax.f32 %v923, %v620
        %v926 = vmax.f32 %v924, %v624
        %v927 = vmax.f32 %v925, %v630
        %v928 = vmax.f32 %v926, %v634
        %v929 = vmax.f32 %v927, %v640
        %v930 = vmax.f32 %v928, %v644
        %v931 = vmax.f32 %v929, %v650
        %v932 = vmax.f32 %v930, %v654
        %v933 = vmax.f32 %v931, %v660
        %v934 = vmax.f32 %v932, %v664
        %v935 = vmax.f32 %v933, %v934
        %v936 = vrot.slane %v935, 4
        %v937 = vmax.f32 %v935, %v936
        %v938 = vrot.slane %v937, 2
        %v939 = vmax.f32 %v937, %v938
        %v940 = vrot.slane %v939, 1
        %v941 = vmax.f32 %v939, %v940
        %v942 = vsub.f32 %v477, %v899
        %v943 = vsub.f32 %v479, %v920
        %v944 = vsub.f32 %v590, %v941
        %v945 = vsub.f32 %v481, %v899
        %v946 = vsub.f32 %v483, %v920
        %v947 = vsub.f32 %v594, %v941
        %v948 = vsub.f32 %v487, %v899
        %v949 = vsub.f32 %v489, %v920
        %v950 = vsub.f32 %v600, %v941
        %v951 = vsub.f32 %v491, %v899
        %v952 = vsub.f32 %v493, %v920
        %v953 = vsub.f32 %v604, %v941
        %v954 = vsub.f32 %v497, %v899
        %v955 = vsub.f32 %v499, %v920
        %v956 = vsub.f32 %v610, %v941
        %v957 = vsub.f32 %v501, %v899
        %v958 = vsub.f32 %v503, %v920
        %v959 = vsub.f32 %v614, %v941
        %v960 = vsub.f32 %v507, %v899
        %v961 = vsub.f32 %v509, %v920
        %v962 = vsub.f32 %v620, %v941
        %v963 = vsub.f32 %v511, %v899
        %v964 = vsub.f32 %v513, %v920
        %v965 = vsub.f32 %v624, %v941
        %v966 = vsub.f32 %v517, %v899
        %v967 = vsub.f32 %v519, %v920
        %v968 = vsub.f32 %v630, %v941
        %v969 = vsub.f32 %v521, %v899
        %v970 = vsub.f32 %v523, %v920
        %v971 = vsub.f32 %v634, %v941
        %v972 = vsub.f32 %v527, %v899
        %v973 = vsub.f32 %v529, %v920
        %v974 = vsub.f32 %v640, %v941
        %v975 = vsub.f32 %v531, %v899
        %v976 = vsub.f32 %v533, %v920
        %v977 = vsub.f32 %v644, %v941
        %v978 = vsub.f32 %v537, %v899
        %v979 = vsub.f32 %v539, %v920
        %v980 = vsub.f32 %v650, %v941
        %v981 = vsub.f32 %v541, %v899
        %v982 = vsub.f32 %v543, %v920
        %v983 = vsub.f32 %v654, %v941
        %v984 = vsub.f32 %v547, %v899
        %v985 = vsub.f32 %v549, %v920
        %v986 = vsub.f32 %v660, %v941
        %v987 = vsub.f32 %v551, %v899
        %v988 = vsub.f32 %v553, %v920
        %v989 = vsub.f32 %v664, %v941
        %v990 = vmul.f32 %v942, 1.442695
        %v991 = vpow.pop %v990
        %v992 = vmul.f32 %v943, 1.442695
        %v993 = vpow.pop %v992
        %v994 = vmul.f32 %v944, 1.442695
        %v995 = vpow.pop %v994
        %v996 = vmul.f32 %v945, 1.442695
        %v997 = vpow.pop %v996
        %v998 = vmul.f32 %v946, 1.442695
        %v999 = vpow.pop %v998
        %v1000 = vmul.f32 %v947, 1.442695
        %v1001 = vpow.pop %v1000
        %v1002 = vmul.f32 %v948, 1.442695
        %v1003 = vpow.pop %v1002
        %v1004 = vmul.f32 %v949, 1.442695
        %v1005 = vpow.pop %v1004
        %v1006 = vmul.f32 %v950, 1.442695
        %v1007 = vpow.pop %v1006
        %v1008 = vmul.f32 %v951, 1.442695
        %v1009 = vpow.pop %v1008
        %v1010 = vmul.f32 %v952, 1.442695
        %v1011 = vpow.pop %v1010
        %v1012 = vmul.f32 %v953, 1.442695
        %v1013 = vpow.pop %v1012
        %v1014 = vmul.f32 %v954, 1.442695
        %v1015 = vpow.pop %v1014
        %v1016 = vmul.f32 %v955, 1.442695
        %v1017 = vpow.pop %v1016
        %v1018 = vmul.f32 %v956, 1.442695
        %v1019 = vpow.pop %v1018
        %v1020 = vmul.f32 %v957, 1.442695
        %v1021 = vpow.pop %v1020
        %v1022 = vmul.f32 %v958, 1.442695
        %v1023 = vpow.pop %v1022
        %v1024 = vmul.f32 %v959, 1.442695
        %v1025 = vpow.pop %v1024
        %v1026 = vmul.f32 %v960, 1.442695
        %v1027 = vpow.pop %v1026
        %v1028 = vmul.f32 %v961, 1.442695
        %v1029 = vpow.pop %v1028
        %v1030 = vmul.f32 %v962, 1.442695
        %v1031 = vpow.pop %v1030
        %v1032 = vmul.f32 %v963, 1.442695
        %v1033 = vpow.pop %v1032
        %v1034 = vmul.f32 %v964, 1.442695
        %v1035 = vpow.pop %v1034
        %v1036 = vmul.f32 %v965, 1.442695
        %v1037 = vpow.pop %v1036
        %v1038 = vmul.f32 %v966, 1.442695
        %v1039 = vpow.pop %v1038
        %v1040 = vmul.f32 %v967, 1.442695
        %v1041 = vpow.pop %v1040
        %v1042 = vmul.f32 %v968, 1.442695
        %v1043 = vpow.pop %v1042
        %v1044 = vmul.f32 %v969, 1.442695
        %v1045 = vpow.pop %v1044
        %v1046 = vmul.f32 %v970, 1.442695
        %v1047 = vpow.pop %v1046
        %v1048 = vmul.f32 %v971, 1.442695
        %v1049 = vpow.pop %v1048
        %v1050 = vmul.f32 %v972, 1.442695
        %v1051 = vpow.pop %v1050
        %v1052 = vmul.f32 %v973, 1.442695
        %v1053 = vpow.pop %v1052
        %v1054 = vmul.f32 %v974, 1.442695
        %v1055 = vpow.pop %v1054
        %v1056 = vmul.f32 %v975, 1.442695
        %v1057 = vpow.pop %v1056
        %v1058 = vmul.f32 %v976, 1.442695
        %v1059 = vpow.pop %v1058
        %v1060 = vmul.f32 %v977, 1.442695
        %v1061 = vpow.pop %v1060
        %v1062 = vmul.f32 %v978, 1.442695
        %v1063 = vpow.pop %v1062
        %v1064 = vmul.f32 %v979, 1.442695
        %v1065 = vpow.pop %v1064
        %v1066 = vmul.f32 %v980, 1.442695
        %v1067 = vpow.pop %v1066
        %v1068 = vmul.f32 %v981, 1.442695
        %v1069 = vpow.pop %v1068
        %v1070 = vmul.f32 %v982, 1.442695
        %v1071 = vpow.pop %v1070
        %v1072 = vmul.f32 %v983, 1.442695
        %v1073 = vpow.pop %v1072
        %v1074 = vmul.f32 %v984, 1.442695
        %v1075 = vpow.pop %v1074
        %v1076 = vmul.f32 %v985, 1.442695
        %v1077 = vpow.pop %v1076
        %v1078 = vmul.f32 %v986, 1.442695
        %v1079 = vpow.pop %v1078
        %v1080 = vmul.f32 %v987, 1.442695
        %v1081 = vpow.pop %v1080
        %v1082 = vmul.f32 %v988, 1.442695
        %v1083 = vpow.pop %v1082
        %v1084 = vmul.f32 %v989, 1.442695
        %v1085 = vpow.pop %v1084
        %v1086 = vadd.f32 %v991, %v997
        %v1087 = vadd.f32 %v1086, %v1003
        %v1088 = vadd.f32 %v1087, %v1009
        %v1089 = vadd.f32 %v1088, %v1015
        %v1090 = vadd.f32 %v1089, %v1021
        %v1091 = vadd.f32 %v1090, %v1027
        %v1092 = vadd.f32 %v1091, %v1033
        %v1093 = vadd.f32 %v1092, %v1039
        %v1094 = vadd.f32 %v1093, %v1045
        %v1095 = vadd.f32 %v1094, %v1051
        %v1096 = vadd.f32 %v1095, %v1057
        %v1097 = vadd.f32 %v1096, %v1063
        %v1098 = vadd.f32 %v1097, %v1069
        %v1099 = vadd.f32 %v1098, %v1075
        %v1100 = vadd.f32 %v1099, %v1081
        %v1101 = vrot.slane %v1100, 4
        %v1102 = vadd.f32 %v1100, %v1101
        %v1103 = vrot.slane %v1102, 2
        %v1104 = vadd.f32 %v1102, %v1103
        %v1105 = vrot.slane %v1104, 1
        %v1106 = vadd.f32 %v1104, %v1105
        %v1107 = vadd.f32 %v993, %v999
        %v1108 = vadd.f32 %v1107, %v1005
        %v1109 = vadd.f32 %v1108, %v1011
        %v1110 = vadd.f32 %v1109, %v1017
        %v1111 = vadd.f32 %v1110, %v1023
        %v1112 = vadd.f32 %v1111, %v1029
        %v1113 = vadd.f32 %v1112, %v1035
        %v1114 = vadd.f32 %v1113, %v1041
        %v1115 = vadd.f32 %v1114, %v1047
        %v1116 = vadd.f32 %v1115, %v1053
        %v1117 = vadd.f32 %v1116, %v1059
        %v1118 = vadd.f32 %v1117, %v1065
        %v1119 = vadd.f32 %v1118, %v1071
        %v1120 = vadd.f32 %v1119, %v1077
        %v1121 = vadd.f32 %v1120, %v1083
        %v1122 = vrot.slane %v1121, 4
        %v1123 = vadd.f32 %v1121, %v1122
        %v1124 = vrot.slane %v1123, 2
        %v1125 = vadd.f32 %v1123, %v1124
        %v1126 = vrot.slane %v1125, 1
        %v1127 = vadd.f32 %v1125, %v1126
        %v1128 = vadd.f32 %v995, %v1001
        %v1129 = vadd.f32 %v1128, %v1007
        %v1130 = vadd.f32 %v1129, %v1013
        %v1131 = vadd.f32 %v1130, %v1019
        %v1132 = vadd.f32 %v1131, %v1025
        %v1133 = vadd.f32 %v1132, %v1031
        %v1134 = vadd.f32 %v1133, %v1037
        %v1135 = vadd.f32 %v1134, %v1043
        %v1136 = vadd.f32 %v1135, %v1049
        %v1137 = vadd.f32 %v1136, %v1055
        %v1138 = vadd.f32 %v1137, %v1061
        %v1139 = vadd.f32 %v1138, %v1067
        %v1140 = vadd.f32 %v1139, %v1073
        %v1141 = vadd.f32 %v1140, %v1079
        %v1142 = vadd.f32 %v1141, %v1085
        %v1143 = vrot.slane %v1142, 4
        %v1144 = vadd.f32 %v1142, %v1143
        %v1145 = vrot.slane %v1144, 2
        %v1146 = vadd.f32 %v1144, %v1145
        %v1147 = vrot.slane %v1146, 1
        %v1148 = vadd.f32 %v1146, %v1147
        %v1149 = vrcp.pop %v1106
        %v1150 = vrcp.pop %v1127
        %v1151 = vrcp.pop %v1148
        %v1152 = vmul.f32 %v991, %v1149
        %v1153 = vmul.f32 %v993, %v1150
        %v1154 = vmul.f32 %v995, %v1151
        %v1155 = vmul.f32 %v997, %v1149
        %v1156 = vmul.f32 %v999, %v1150
        %v1157 = vmul.f32 %v1001, %v1151
        %v1158 = vmul.f32 %v1003, %v1149
        %v1159 = vmul.f32 %v1005, %v1150
        %v1160 = vmul.f32 %v1007, %v1151
        %v1161 = vmul.f32 %v1009, %v1149
        %v1162 = vmul.f32 %v1011, %v1150
        %v1163 = vmul.f32 %v1013, %v1151
        %v1164 = vmul.f32 %v1015, %v1149
        %v1165 = vmul.f32 %v1017, %v1150
        %v1166 = vmul.f32 %v1019, %v1151
        %v1167 = vmul.f32 %v1021, %v1149
        %v1168 = vmul.f32 %v1023, %v1150
        %v1169 = vmul.f32 %v1025, %v1151
        %v1170 = vmul.f32 %v1027, %v1149
        %v1171 = vmul.f32 %v1029, %v1150
        %v1172 = vmul.f32 %v1031, %v1151
        %v1173 = vmul.f32 %v1033, %v1149
        %v1174 = vmul.f32 %v1035, %v1150
        %v1175 = vmul.f32 %v1037, %v1151
        %v1176 = vmul.f32 %v1039, %v1149
        %v1177 = vmul.f32 %v1041, %v1150
        %v1178 = vmul.f32 %v1043, %v1151
        %v1179 = vmul.f32 %v1045, %v1149
        %v1180 = vmul.f32 %v1047, %v1150
        %v1181 = vmul.f32 %v1049, %v1151
        %v1182 = vmul.f32 %v1051, %v1149
        %v1183 = vmul.f32 %v1053, %v1150
        %v1184 = vmul.f32 %v1055, %v1151
        %v1185 = vmul.f32 %v1057, %v1149
        %v1186 = vmul.f32 %v1059, %v1150
        %v1187 = vmul.f32 %v1061, %v1151
        %v1188 = vmul.f32 %v1063, %v1149
        %v1189 = vmul.f32 %v1065, %v1150
        %v1190 = vmul.f32 %v1067, %v1151
        %v1191 = vmul.f32 %v1069, %v1149
        %v1192 = vmul.f32 %v1071, %v1150
        %v1193 = vmul.f32 %v1073, %v1151
        %v1194 = vmul.f32 %v1075, %v1149
        %v1195 = vmul.f32 %v1077, %v1150
        %v1196 = vmul.f32 %v1079, %v1151
        %v1197 = vmul.f32 %v1081, %v1149
        %v1198 = vmul.f32 %v1083, %v1150
        %v1199 = vmul.f32 %v1085, %v1151
        %v1200 = vpack.c.bf16 %v1155, %v1152
        %v1201 = vpack.c.bf16 %v1156, %v1153
        %v1202 = vpack.c.bf16 %v1157, %v1154
        %v1203 = vpack.c.bf16 %v1161, %v1158
        %v1204 = vpack.c.bf16 %v1162, %v1159
        %v1205 = vpack.c.bf16 %v1163, %v1160
        %v1206 = vpack.c.bf16 %v1167, %v1164
        %v1207 = vpack.c.bf16 %v1168, %v1165
        %v1208 = vpack.c.bf16 %v1169, %v1166
        %v1209 = vpack.c.bf16 %v1173, %v1170
        %v1210 = vpack.c.bf16 %v1174, %v1171
        %v1211 = vpack.c.bf16 %v1175, %v1172
        %v1212 = vpack.c.bf16 %v1179, %v1176
        %v1213 = vpack.c.bf16 %v1180, %v1177
        %v1214 = vpack.c.bf16 %v1181, %v1178
        %v1215 = vpack.c.bf16 %v1185, %v1182
        %v1216 = vpack.c.bf16 %v1186, %v1183
        %v1217 = vpack.c.bf16 %v1187, %v1184
        %v1218 = vpack.c.bf16 %v1191, %v1188
        %v1219 = vpack.c.bf16 %v1192, %v1189
        %v1220 = vpack.c.bf16 %v1193, %v1190
        %v1221 = vpack.c.bf16 %v1197, %v1194
        %v1222 = vpack.c.bf16 %v1198, %v1195
        %v1223 = vpack.c.bf16 %v1199, %v1196
        %v1224 = vpack.c.bf16 %v596, %v592
        %v1225 = vpack.c.bf16 %v707, %v703
        %v1226 = vpack.c.bf16 %v709, %v705
        %v1227 = vpack.c.bf16 %v819, %v816
        %v1228 = vpack.c.bf16 %v606, %v602
        %v1229 = vpack.c.bf16 %v717, %v713
        %v1230 = vpack.c.bf16 %v719, %v715
        %v1231 = vpack.c.bf16 %v827, %v824
        %v1232 = vpack.c.bf16 %v616, %v612
        %v1233 = vpack.c.bf16 %v727, %v723
        %v1234 = vpack.c.bf16 %v729, %v725
        %v1235 = vpack.c.bf16 %v835, %v832
        %v1236 = vpack.c.bf16 %v626, %v622
        %v1237 = vpack.c.bf16 %v737, %v733
        %v1238 = vpack.c.bf16 %v739, %v735
        %v1239 = vpack.c.bf16 %v843, %v840
        %v1240 = vpack.c.bf16 %v636, %v632
        %v1241 = vpack.c.bf16 %v747, %v743
        %v1242 = vpack.c.bf16 %v749, %v745
        %v1243 = vpack.c.bf16 %v851, %v848
        %v1244 = vpack.c.bf16 %v646, %v642
        %v1245 = vpack.c.bf16 %v757, %v753
        %v1246 = vpack.c.bf16 %v759, %v755
        %v1247 = vpack.c.bf16 %v859, %v856
        %v1248 = vpack.c.bf16 %v656, %v652
        %v1249 = vpack.c.bf16 %v767, %v763
        %v1250 = vpack.c.bf16 %v769, %v765
        %v1251 = vpack.c.bf16 %v867, %v864
        %v1252 = vpack.c.bf16 %v666, %v662
        %v1253 = vpack.c.bf16 %v777, %v773
        %v1254 = vpack.c.bf16 %v779, %v775
        %v1255 = vpack.c.bf16 %v875, %v872
        %v1257 = vlaneseq
        %v1258 = vshrl.u32 %v1257, 7
        %v1259 = vsub.s32 0, %v1258
        %v1260 = vrot.slane %v878, %v1259
        %v1261 = vlaneseq
        %v1262 = vshrl.u32 %v1261, 7
        %v1263 = vsub.s32 1, %v1262
        %v1264 = vrot.slane %v878, %v1263
        %v1265 = vlaneseq
        %v1266 = vshrl.u32 %v1265, 7
        %v1267 = vsub.s32 2, %v1266
        %v1268 = vrot.slane %v878, %v1267
        %v1269 = vlaneseq
        %v1270 = vshrl.u32 %v1269, 7
        %v1271 = vsub.s32 3, %v1270
        %v1272 = vrot.slane %v878, %v1271
        %1277 = vxpose.xlu0.c.b16.start [1/8] %v1200, 128
        %1278 = vxpose.xlu0.c.b16.cont [2/8] %v1203, 128
        %1279 = vxpose.xlu0.c.b16.cont [3/8] %v1206, 128
        %1280 = vxpose.xlu0.c.b16.cont [4/8] %v1209, 128
        %1281 = vxpose.xlu0.c.b16.cont [5/8] %v1212, 128
        %1282 = vxpose.xlu0.c.b16.cont [6/8] %v1215, 128
        %1283 = vxpose.xlu0.c.b16.cont [7/8] %v1218, 128
        %1284 = vxpose.xlu0.c.b16.end [8/8] %v1221, 128
        %v1285 = vpop.trf.xlu0
        %v1286 = vpop.trf.xlu0
        %v1287 = vpop.trf.xlu0
        %v1288 = vpop.trf.xlu0
        %v1289 = vpop.trf.xlu0
        %v1290 = vpop.trf.xlu0
        %v1291 = vpop.trf.xlu0
        %v1292 = vpop.trf.xlu0
        %1293 = vxpose.xlu0.c.b16.start [1/8] %v1201, 128
        %1294 = vxpose.xlu0.c.b16.cont [2/8] %v1204, 128
        %1295 = vxpose.xlu0.c.b16.cont [3/8] %v1207, 128
        %1296 = vxpose.xlu0.c.b16.cont [4/8] %v1210, 128
        %1297 = vxpose.xlu0.c.b16.cont [5/8] %v1213, 128
        %1298 = vxpose.xlu0.c.b16.cont [6/8] %v1216, 128
        %1299 = vxpose.xlu0.c.b16.cont [7/8] %v1219, 128
        %1300 = vxpose.xlu0.c.b16.end [8/8] %v1222, 128
        %v1301 = vpop.trf.xlu0
        %v1302 = vpop.trf.xlu0
        %v1303 = vpop.trf.xlu0
        %v1304 = vpop.trf.xlu0
        %v1305 = vpop.trf.xlu0
        %v1306 = vpop.trf.xlu0
        %v1307 = vpop.trf.xlu0
        %v1308 = vpop.trf.xlu0
        %1309 = vxpose.xlu0.c.b16.start [1/8] %v1202, 128
        %1310 = vxpose.xlu0.c.b16.cont [2/8] %v1205, 128
        %1311 = vxpose.xlu0.c.b16.cont [3/8] %v1208, 128
        %1312 = vxpose.xlu0.c.b16.cont [4/8] %v1211, 128
        %1313 = vxpose.xlu0.c.b16.cont [5/8] %v1214, 128
        %1314 = vxpose.xlu0.c.b16.cont [6/8] %v1217, 128
        %1315 = vxpose.xlu0.c.b16.cont [7/8] %v1220, 128
        %1316 = vxpose.xlu0.c.b16.end [8/8] %v1223, 128
        %v1317 = vpop.trf.xlu0
        %v1318 = vpop.trf.xlu0
        %v1319 = vpop.trf.xlu0
        %v1320 = vpop.trf.xlu0
        %v1321 = vpop.trf.xlu0
        %v1322 = vpop.trf.xlu0
        %v1323 = vpop.trf.xlu0
        %v1324 = vpop.trf.xlu0
        %1325 = vmatprep.subr.bf16.mxu0 %v1225
        %1326 = vmatpush1.bf16.msra.mxu0 %v1224
        %1327 = vmatprep.subr.bf16.mxu0 %v1229
        %1328 = vmatpush1.bf16.msra.mxu0 %v1228
        %1329 = vmatprep.subr.bf16.mxu0 %v1233
        %1330 = vmatpush1.bf16.msra.mxu0 %v1232
        %1331 = vmatprep.subr.bf16.mxu0 %v1237
        %1332 = vmatpush1.bf16.msra.mxu0 %v1236
        %1333 = vmatprep.subr.bf16.mxu0 %v1241
        %1334 = vmatpush1.bf16.msra.mxu0 %v1240
        %1335 = vmatprep.subr.bf16.mxu0 %v1245
        %1336 = vmatpush1.bf16.msra.mxu0 %v1244
        %1337 = vmatprep.subr.bf16.mxu0 %v1249
        %1338 = vmatpush1.bf16.msra.mxu0 %v1248
        %1339 = vmatprep.subr.bf16.mxu0 %v1253
        %1340 = vmatpush1.bf16.msra.mxu0 %v1252
        %1341 = vmatprep.subr.bf16.mxu0 0
        %1342 = vmatpush1.bf16.msra.mxu0 0
        %1343 = vmatprep.subr.bf16.mxu0 0
        %1344 = vmatpush1.bf16.msra.mxu0 0
        %1345 = vmatprep.subr.bf16.mxu0 0
        %1346 = vmatpush1.bf16.msra.mxu0 0
        %1347 = vmatprep.subr.bf16.mxu0 0
        %1348 = vmatpush1.bf16.msra.mxu0 0
        %1349 = vmatprep.subr.bf16.mxu0 0
        %1350 = vmatpush1.bf16.msra.mxu0 0
        %1351 = vmatprep.subr.bf16.mxu0 0
        %1352 = vmatpush1.bf16.msra.mxu0 0
        %1353 = vmatprep.subr.bf16.mxu0 0
        %1354 = vmatpush1.bf16.msra.mxu0 0
        %1355 = vmatprep.subr.bf16.mxu0 0
        %1356 = vmatpush1.bf16.msra.mxu0 0
        %1357 = vmatprep.mubr.bf16.mxu0 0
        %1358 = vmatmul.mubr.bf16.gmra.mrb[0].mxu0 %v1285
        %v1359 = vpop.f32.mrb[0].mxu0
        %v1360 = vadd.f32 %v1260, %v1359
        %v1361 = vpop.f32.mrb[0].mxu0
        %v1362 = vadd.f32 %v1264, %v1361
        %v1363 = vpop.f32.mrb[0].mxu0
        %v1364 = vadd.f32 %v1260, %v1363
        %v1365 = vpop.f32.mrb[0].mxu0
        %v1366 = vadd.f32 %v1264, %v1365
        %1367 = vmatprep.mubr.bf16.mxu0 0
        %1368 = vmatmul.mubr.bf16.gmra.mrb[0].mxu0 %v1286
        %v1369 = vpop.f32.mrb[0].mxu0
        %v1370 = vadd.f32 %v1260, %v1369
        %v1371 = vpop.f32.mrb[0].mxu0
        %v1372 = vadd.f32 %v1264, %v1371
        %v1373 = vpop.f32.mrb[0].mxu0
        %v1374 = vadd.f32 %v1260, %v1373
        %v1375 = vpop.f32.mrb[0].mxu0
        %v1376 = vadd.f32 %v1264, %v1375
        %1377 = vmatprep.mubr.bf16.mxu0 0
        %1378 = vmatmul.mubr.bf16.gmra.mrb[0].mxu0 %v1287
        %v1379 = vpop.f32.mrb[0].mxu0
        %v1380 = vadd.f32 %v1260, %v1379
        %v1381 = vpop.f32.mrb[0].mxu0
        %v1382 = vadd.f32 %v1264, %v1381
        %v1383 = vpop.f32.mrb[0].mxu0
        %v1384 = vadd.f32 %v1260, %v1383
        %v1385 = vpop.f32.mrb[0].mxu0
        %v1386 = vadd.f32 %v1264, %v1385
        %1387 = vmatprep.mubr.bf16.mxu0 0
        %1388 = vmatmul.mubr.bf16.gmra.mrb[0].mxu0 %v1288
        %v1389 = vpop.f32.mrb[0].mxu0
        %v1390 = vadd.f32 %v1260, %v1389
        %v1391 = vpop.f32.mrb[0].mxu0
        %v1392 = vadd.f32 %v1264, %v1391
        %v1393 = vpop.f32.mrb[0].mxu0
        %v1394 = vadd.f32 %v1260, %v1393
        %v1395 = vpop.f32.mrb[0].mxu0
        %v1396 = vadd.f32 %v1264, %v1395
        %1397 = vmatprep.mubr.bf16.mxu0 0
        %1398 = vmatmul.mubr.bf16.gmra.mrb[0].mxu0 %v1289
        %v1399 = vpop.f32.mrb[0].mxu0
        %v1400 = vadd.f32 %v1260, %v1399
        %v1401 = vpop.f32.mrb[0].mxu0
        %v1402 = vadd.f32 %v1264, %v1401
        %v1403 = vpop.f32.mrb[0].mxu0
        %v1404 = vadd.f32 %v1260, %v1403
        %v1405 = vpop.f32.mrb[0].mxu0
        %v1406 = vadd.f32 %v1264, %v1405
        %1407 = vmatprep.mubr.bf16.mxu0 0
        %1408 = vmatmul.mubr.bf16.gmra.mrb[0].mxu0 %v1290
        %v1409 = vpop.f32.mrb[0].mxu0
        %v1410 = vadd.f32 %v1260, %v1409
        %v1411 = vpop.f32.mrb[0].mxu0
        %v1412 = vadd.f32 %v1264, %v1411
        %v1413 = vpop.f32.mrb[0].mxu0
        %v1414 = vadd.f32 %v1260, %v1413
        %v1415 = vpop.f32.mrb[0].mxu0
        %v1416 = vadd.f32 %v1264, %v1415
        %1417 = vmatprep.mubr.bf16.mxu0 0
        %1418 = vmatmul.mubr.bf16.gmra.mrb[0].mxu0 %v1291
        %v1419 = vpop.f32.mrb[0].mxu0
        %v1420 = vadd.f32 %v1260, %v1419
        %v1421 = vpop.f32.mrb[0].mxu0
        %v1422 = vadd.f32 %v1264, %v1421
        %v1423 = vpop.f32.mrb[0].mxu0
        %v1424 = vadd.f32 %v1260, %v1423
        %v1425 = vpop.f32.mrb[0].mxu0
        %v1426 = vadd.f32 %v1264, %v1425
        %1427 = vmatprep.mubr.bf16.mxu0 0
        %1428 = vmatmul.mubr.bf16.gmra.mrb[0].mxu0 %v1292
        %v1429 = vpop.f32.mrb[0].mxu0
        %v1430 = vadd.f32 %v1260, %v1429
        %v1431 = vpop.f32.mrb[0].mxu0
        %v1432 = vadd.f32 %v1264, %v1431
        %v1433 = vpop.f32.mrb[0].mxu0
        %v1434 = vadd.f32 %v1260, %v1433
        %v1435 = vpop.f32.mrb[0].mxu0
        %v1436 = vadd.f32 %v1264, %v1435
        %1437 = vmatprep.mubr.bf16.mxu0 0
        %1438 = vmatmul.mubr.bf16.gmra.mrb[0].mxu0 %v1301
        %v1439 = vpop.f32.mrb[0].mxu0
        %v1440 = vadd.f32 %v1260, %v1439
        %v1441 = vpop.f32.mrb[0].mxu0
        %v1442 = vadd.f32 %v1264, %v1441
        %v1443 = vpop.f32.mrb[0].mxu0
        %v1444 = vadd.f32 %v1260, %v1443
        %v1445 = vpop.f32.mrb[0].mxu0
        %v1446 = vadd.f32 %v1264, %v1445
        %1447 = vmatprep.mubr.bf16.mxu0 0
        %1448 = vmatmul.mubr.bf16.gmra.mrb[0].mxu0 %v1302
        %v1449 = vpop.f32.mrb[0].mxu0
        %v1450 = vadd.f32 %v1260, %v1449
        %v1451 = vpop.f32.mrb[0].mxu0
        %v1452 = vadd.f32 %v1264, %v1451
        %v1453 = vpop.f32.mrb[0].mxu0
        %v1454 = vadd.f32 %v1260, %v1453
        %v1455 = vpop.f32.mrb[0].mxu0
        %v1456 = vadd.f32 %v1264, %v1455
        %1457 = vmatprep.mubr.bf16.mxu0 0
        %1458 = vmatmul.mubr.bf16.gmra.mrb[0].mxu0 %v1303
        %v1459 = vpop.f32.mrb[0].mxu0
        %v1460 = vadd.f32 %v1260, %v1459
        %v1461 = vpop.f32.mrb[0].mxu0
        %v1462 = vadd.f32 %v1264, %v1461
        %v1463 = vpop.f32.mrb[0].mxu0
        %v1464 = vadd.f32 %v1260, %v1463
        %v1465 = vpop.f32.mrb[0].mxu0
        %v1466 = vadd.f32 %v1264, %v1465
        %1467 = vmatprep.mubr.bf16.mxu0 0
        %1468 = vmatmul.mubr.bf16.gmra.mrb[0].mxu0 %v1304
        %v1469 = vpop.f32.mrb[0].mxu0
        %v1470 = vadd.f32 %v1260, %v1469
        %v1471 = vpop.f32.mrb[0].mxu0
        %v1472 = vadd.f32 %v1264, %v1471
        %v1473 = vpop.f32.mrb[0].mxu0
        %v1474 = vadd.f32 %v1260, %v1473
        %v1475 = vpop.f32.mrb[0].mxu0
        %v1476 = vadd.f32 %v1264, %v1475
        %1477 = vmatprep.mubr.bf16.mxu0 0
        %1478 = vmatmul.mubr.bf16.gmra.mrb[0].mxu0 %v1305
        %v1479 = vpop.f32.mrb[0].mxu0
        %v1480 = vadd.f32 %v1260, %v1479
        %v1481 = vpop.f32.mrb[0].mxu0
        %v1482 = vadd.f32 %v1264, %v1481
        %v1483 = vpop.f32.mrb[0].mxu0
        %v1484 = vadd.f32 %v1260, %v1483
        %v1485 = vpop.f32.mrb[0].mxu0
        %v1486 = vadd.f32 %v1264, %v1485
        %1487 = vmatprep.mubr.bf16.mxu0 0
        %1488 = vmatmul.mubr.bf16.gmra.mrb[0].mxu0 %v1306
        %v1489 = vpop.f32.mrb[0].mxu0
        %v1490 = vadd.f32 %v1260, %v1489
        %v1491 = vpop.f32.mrb[0].mxu0
        %v1492 = vadd.f32 %v1264, %v1491
        %v1493 = vpop.f32.mrb[0].mxu0
        %v1494 = vadd.f32 %v1260, %v1493
        %v1495 = vpop.f32.mrb[0].mxu0
        %v1496 = vadd.f32 %v1264, %v1495
        %1497 = vmatprep.mubr.bf16.mxu0 0
        %1498 = vmatmul.mubr.bf16.gmra.mrb[0].mxu0 %v1307
        %v1499 = vpop.f32.mrb[0].mxu0
        %v1500 = vadd.f32 %v1260, %v1499
        %v1501 = vpop.f32.mrb[0].mxu0
        %v1502 = vadd.f32 %v1264, %v1501
        %v1503 = vpop.f32.mrb[0].mxu0
        %v1504 = vadd.f32 %v1260, %v1503
        %v1505 = vpop.f32.mrb[0].mxu0
        %v1506 = vadd.f32 %v1264, %v1505
        %1507 = vmatprep.mubr.bf16.mxu0 0
        %1508 = vmatmul.mubr.bf16.gmra.mrb[0].mxu0 %v1308
        %v1509 = vpop.f32.mrb[0].mxu0
        %v1510 = vadd.f32 %v1260, %v1509
        %v1511 = vpop.f32.mrb[0].mxu0
        %v1512 = vadd.f32 %v1264, %v1511
        %v1513 = vpop.f32.mrb[0].mxu0
        %v1514 = vadd.f32 %v1260, %v1513
        %v1515 = vpop.f32.mrb[0].mxu0
        %v1516 = vadd.f32 %v1264, %v1515
        %1517 = vmatprep.mubr.bf16.mxu0 0
        %1518 = vmatmul.mubr.bf16.gmra.mrb[0].mxu0 %v1317
        %v1519 = vpop.f32.mrb[0].mxu0
        %v1520 = vadd.f32 %v1260, %v1519
        %v1521 = vpop.f32.mrb[0].mxu0
        %v1522 = vadd.f32 %v1264, %v1521
        %v1523 = vpop.f32.mrb[0].mxu0
        %v1524 = vadd.f32 %v1260, %v1523
        %v1525 = vpop.f32.mrb[0].mxu0
        %v1526 = vadd.f32 %v1264, %v1525
        %1527 = vmatprep.mubr.bf16.mxu0 0
        %1528 = vmatmul.mubr.bf16.gmra.mrb[0].mxu0 %v1318
        %v1529 = vpop.f32.mrb[0].mxu0
        %v1530 = vadd.f32 %v1260, %v1529
        %v1531 = vpop.f32.mrb[0].mxu0
        %v1532 = vadd.f32 %v1264, %v1531
        %v1533 = vpop.f32.mrb[0].mxu0
        %v1534 = vadd.f32 %v1260, %v1533
        %v1535 = vpop.f32.mrb[0].mxu0
        %v1536 = vadd.f32 %v1264, %v1535
        %1537 = vmatprep.mubr.bf16.mxu0 0
        %1538 = vmatmul.mubr.bf16.gmra.mrb[0].mxu0 %v1319
        %v1539 = vpop.f32.mrb[0].mxu0
        %v1540 = vadd.f32 %v1260, %v1539
        %v1541 = vpop.f32.mrb[0].mxu0
        %v1542 = vadd.f32 %v1264, %v1541
        %v1543 = vpop.f32.mrb[0].mxu0
        %v1544 = vadd.f32 %v1260, %v1543
        %v1545 = vpop.f32.mrb[0].mxu0
        %v1546 = vadd.f32 %v1264, %v1545
        %1547 = vmatprep.mubr.bf16.mxu0 0
        %1548 = vmatmul.mubr.bf16.gmra.mrb[0].mxu0 %v1320
        %v1549 = vpop.f32.mrb[0].mxu0
        %v1550 = vadd.f32 %v1260, %v1549
        %v1551 = vpop.f32.mrb[0].mxu0
        %v1552 = vadd.f32 %v1264, %v1551
        %v1553 = vpop.f32.mrb[0].mxu0
        %v1554 = vadd.f32 %v1260, %v1553
        %v1555 = vpop.f32.mrb[0].mxu0
        %v1556 = vadd.f32 %v1264, %v1555
        %1557 = vmatprep.mubr.bf16.mxu0 0
        %1558 = vmatmul.mubr.bf16.gmra.mrb[0].mxu0 %v1321
        %v1559 = vpop.f32.mrb[0].mxu0
        %v1560 = vadd.f32 %v1260, %v1559
        %v1561 = vpop.f32.mrb[0].mxu0
        %v1562 = vadd.f32 %v1264, %v1561
        %v1563 = vpop.f32.mrb[0].mxu0
        %v1564 = vadd.f32 %v1260, %v1563
        %v1565 = vpop.f32.mrb[0].mxu0
        %v1566 = vadd.f32 %v1264, %v1565
        %1567 = vmatprep.mubr.bf16.mxu0 0
        %1568 = vmatmul.mubr.bf16.gmra.mrb[0].mxu0 %v1322
        %v1569 = vpop.f32.mrb[0].mxu0
        %v1570 = vadd.f32 %v1260, %v1569
        %v1571 = vpop.f32.mrb[0].mxu0
        %v1572 = vadd.f32 %v1264, %v1571
        %v1573 = vpop.f32.mrb[0].mxu0
        %v1574 = vadd.f32 %v1260, %v1573
        %v1575 = vpop.f32.mrb[0].mxu0
        %v1576 = vadd.f32 %v1264, %v1575
        %1577 = vmatprep.mubr.bf16.mxu0 0
        %1578 = vmatmul.mubr.bf16.gmra.mrb[0].mxu0 %v1323
        %v1579 = vpop.f32.mrb[0].mxu0
        %v1580 = vadd.f32 %v1260, %v1579
        %v1581 = vpop.f32.mrb[0].mxu0
        %v1582 = vadd.f32 %v1264, %v1581
        %v1583 = vpop.f32.mrb[0].mxu0
        %v1584 = vadd.f32 %v1260, %v1583
        %v1585 = vpop.f32.mrb[0].mxu0
        %v1586 = vadd.f32 %v1264, %v1585
        %1587 = vmatprep.mubr.bf16.mxu0 0
        %1588 = vmatmul.mubr.bf16.gmra.mrb[0].mxu0 %v1324
        %v1589 = vpop.f32.mrb[0].mxu0
        %v1590 = vadd.f32 %v1260, %v1589
        %v1591 = vpop.f32.mrb[0].mxu0
        %v1592 = vadd.f32 %v1264, %v1591
        %v1593 = vpop.f32.mrb[0].mxu0
        %v1594 = vadd.f32 %v1260, %v1593
        %v1595 = vpop.f32.mrb[0].mxu0
        %v1596 = vadd.f32 %v1264, %v1595
        %1597 = vdwg.mxu0
        %1598 = vmatprep.subr.bf16.mxu0 %v1227
        %1599 = vmatpush1.bf16.msra.mxu0 %v1226
        %1600 = vmatprep.subr.bf16.mxu0 %v1231
        %1601 = vmatpush1.bf16.msra.mxu0 %v1230
        %1602 = vmatprep.subr.bf16.mxu0 %v1235
        %1603 = vmatpush1.bf16.msra.mxu0 %v1234
        %1604 = vmatprep.subr.bf16.mxu0 %v1239
        %1605 = vmatpush1.bf16.msra.mxu0 %v1238
        %1606 = vmatprep.subr.bf16.mxu0 %v1243
        %1607 = vmatpush1.bf16.msra.mxu0 %v1242
        %1608 = vmatprep.subr.bf16.mxu0 %v1247
        %1609 = vmatpush1.bf16.msra.mxu0 %v1246
        %1610 = vmatprep.subr.bf16.mxu0 %v1251
        %1611 = vmatpush1.bf16.msra.mxu0 %v1250
        %1612 = vmatprep.subr.bf16.mxu0 %v1255
        %1613 = vmatpush1.bf16.msra.mxu0 %v1254
        %1614 = vmatprep.subr.bf16.mxu0 0
        %1615 = vmatpush1.bf16.msra.mxu0 0
        %1616 = vmatprep.subr.bf16.mxu0 0
        %1617 = vmatpush1.bf16.msra.mxu0 0
        %1618 = vmatprep.subr.bf16.mxu0 0
        %1619 = vmatpush1.bf16.msra.mxu0 0
        %1620 = vmatprep.subr.bf16.mxu0 0
        %1621 = vmatpush1.bf16.msra.mxu0 0
        %1622 = vmatprep.subr.bf16.mxu0 0
        %1623 = vmatpush1.bf16.msra.mxu0 0
        %1624 = vmatprep.subr.bf16.mxu0 0
        %1625 = vmatpush1.bf16.msra.mxu0 0
        %1626 = vmatprep.subr.bf16.mxu0 0
        %1627 = vmatpush1.bf16.msra.mxu0 0
        %1628 = vmatprep.subr.bf16.mxu0 0
        %1629 = vmatpush1.bf16.msra.mxu0 0
        %1630 = vmatprep.mubr.bf16.mxu0 0
        %1631 = vmatmul.mubr.bf16.gmra.mrb[0].mxu0 %v1285
        %v1632 = vpop.f32.mrb[0].mxu0
        %v1633 = vadd.f32 %v1268, %v1632
        %v1634 = vpop.f32.mrb[0].mxu0
        %v1635 = vadd.f32 %v1272, %v1634
        %v1636 = vpop.f32.mrb[0].mxu0
        %v1637 = vadd.f32 %v1268, %v1636
        %v1638 = vpop.f32.mrb[0].mxu0
        %v1639 = vadd.f32 %v1272, %v1638
        %1640 = vmatprep.mubr.bf16.mxu0 0
        %1641 = vmatmul.mubr.bf16.gmra.mrb[0].mxu0 %v1286
        %v1642 = vpop.f32.mrb[0].mxu0
        %v1643 = vadd.f32 %v1268, %v1642
        %v1644 = vpop.f32.mrb[0].mxu0
        %v1645 = vadd.f32 %v1272, %v1644
        %v1646 = vpop.f32.mrb[0].mxu0
        %v1647 = vadd.f32 %v1268, %v1646
        %v1648 = vpop.f32.mrb[0].mxu0
        %v1649 = vadd.f32 %v1272, %v1648
        %1650 = vmatprep.mubr.bf16.mxu0 0
        %1651 = vmatmul.mubr.bf16.gmra.mrb[0].mxu0 %v1287
        %v1652 = vpop.f32.mrb[0].mxu0
        %v1653 = vadd.f32 %v1268, %v1652
        %v1654 = vpop.f32.mrb[0].mxu0
        %v1655 = vadd.f32 %v1272, %v1654
        %v1656 = vpop.f32.mrb[0].mxu0
        %v1657 = vadd.f32 %v1268, %v1656
        %v1658 = vpop.f32.mrb[0].mxu0
        %v1659 = vadd.f32 %v1272, %v1658
        %1660 = vmatprep.mubr.bf16.mxu0 0
        %1661 = vmatmul.mubr.bf16.gmra.mrb[0].mxu0 %v1288
        %v1662 = vpop.f32.mrb[0].mxu0
        %v1663 = vadd.f32 %v1268, %v1662
        %v1664 = vpop.f32.mrb[0].mxu0
        %v1665 = vadd.f32 %v1272, %v1664
        %v1666 = vpop.f32.mrb[0].mxu0
        %v1667 = vadd.f32 %v1268, %v1666
        %v1668 = vpop.f32.mrb[0].mxu0
        %v1669 = vadd.f32 %v1272, %v1668
        %1670 = vmatprep.mubr.bf16.mxu0 0
        %1671 = vmatmul.mubr.bf16.gmra.mrb[0].mxu0 %v1289
        %v1672 = vpop.f32.mrb[0].mxu0
        %v1673 = vadd.f32 %v1268, %v1672
        %v1674 = vpop.f32.mrb[0].mxu0
        %v1675 = vadd.f32 %v1272, %v1674
        %v1676 = vpop.f32.mrb[0].mxu0
        %v1677 = vadd.f32 %v1268, %v1676
        %v1678 = vpop.f32.mrb[0].mxu0
        %v1679 = vadd.f32 %v1272, %v1678
        %1680 = vmatprep.mubr.bf16.mxu0 0
        %1681 = vmatmul.mubr.bf16.gmra.mrb[0].mxu0 %v1290
        %v1682 = vpop.f32.mrb[0].mxu0
        %v1683 = vadd.f32 %v1268, %v1682
        %v1684 = vpop.f32.mrb[0].mxu0
        %v1685 = vadd.f32 %v1272, %v1684
        %v1686 = vpop.f32.mrb[0].mxu0
        %v1687 = vadd.f32 %v1268, %v1686
        %v1688 = vpop.f32.mrb[0].mxu0
        %v1689 = vadd.f32 %v1272, %v1688
        %1690 = vmatprep.mubr.bf16.mxu0 0
        %1691 = vmatmul.mubr.bf16.gmra.mrb[0].mxu0 %v1291
        %v1692 = vpop.f32.mrb[0].mxu0
        %v1693 = vadd.f32 %v1268, %v1692
        %v1694 = vpop.f32.mrb[0].mxu0
        %v1695 = vadd.f32 %v1272, %v1694
        %v1696 = vpop.f32.mrb[0].mxu0
        %v1697 = vadd.f32 %v1268, %v1696
        %v1698 = vpop.f32.mrb[0].mxu0
        %v1699 = vadd.f32 %v1272, %v1698
        %1700 = vmatprep.mubr.bf16.mxu0 0
        %1701 = vmatmul.mubr.bf16.gmra.mrb[0].mxu0 %v1292
        %v1702 = vpop.f32.mrb[0].mxu0
        %v1703 = vadd.f32 %v1268, %v1702
        %v1704 = vpop.f32.mrb[0].mxu0
        %v1705 = vadd.f32 %v1272, %v1704
        %v1706 = vpop.f32.mrb[0].mxu0
        %v1707 = vadd.f32 %v1268, %v1706
        %v1708 = vpop.f32.mrb[0].mxu0
        %v1709 = vadd.f32 %v1272, %v1708
        %1710 = vmatprep.mubr.bf16.mxu0 0
        %1711 = vmatmul.mubr.bf16.gmra.mrb[0].mxu0 %v1301
        %v1712 = vpop.f32.mrb[0].mxu0
        %v1713 = vadd.f32 %v1268, %v1712
        %v1714 = vpop.f32.mrb[0].mxu0
        %v1715 = vadd.f32 %v1272, %v1714
        %v1716 = vpop.f32.mrb[0].mxu0
        %v1717 = vadd.f32 %v1268, %v1716
        %v1718 = vpop.f32.mrb[0].mxu0
        %v1719 = vadd.f32 %v1272, %v1718
        %1720 = vmatprep.mubr.bf16.mxu0 0
        %1721 = vmatmul.mubr.bf16.gmra.mrb[0].mxu0 %v1302
        %v1722 = vpop.f32.mrb[0].mxu0
        %v1723 = vadd.f32 %v1268, %v1722
        %v1724 = vpop.f32.mrb[0].mxu0
        %v1725 = vadd.f32 %v1272, %v1724
        %v1726 = vpop.f32.mrb[0].mxu0
        %v1727 = vadd.f32 %v1268, %v1726
        %v1728 = vpop.f32.mrb[0].mxu0
        %v1729 = vadd.f32 %v1272, %v1728
        %1730 = vmatprep.mubr.bf16.mxu0 0
        %1731 = vmatmul.mubr.bf16.gmra.mrb[0].mxu0 %v1303
        %v1732 = vpop.f32.mrb[0].mxu0
        %v1733 = vadd.f32 %v1268, %v1732
        %v1734 = vpop.f32.mrb[0].mxu0
        %v1735 = vadd.f32 %v1272, %v1734
        %v1736 = vpop.f32.mrb[0].mxu0
        %v1737 = vadd.f32 %v1268, %v1736
        %v1738 = vpop.f32.mrb[0].mxu0
        %v1739 = vadd.f32 %v1272, %v1738
        %1740 = vmatprep.mubr.bf16.mxu0 0
        %1741 = vmatmul.mubr.bf16.gmra.mrb[0].mxu0 %v1304
        %v1742 = vpop.f32.mrb[0].mxu0
        %v1743 = vadd.f32 %v1268, %v1742
        %v1744 = vpop.f32.mrb[0].mxu0
        %v1745 = vadd.f32 %v1272, %v1744
        %v1746 = vpop.f32.mrb[0].mxu0
        %v1747 = vadd.f32 %v1268, %v1746
        %v1748 = vpop.f32.mrb[0].mxu0
        %v1749 = vadd.f32 %v1272, %v1748
        %1750 = vmatprep.mubr.bf16.mxu0 0
        %1751 = vmatmul.mubr.bf16.gmra.mrb[0].mxu0 %v1305
        %v1752 = vpop.f32.mrb[0].mxu0
        %v1753 = vadd.f32 %v1268, %v1752
        %v1754 = vpop.f32.mrb[0].mxu0
        %v1755 = vadd.f32 %v1272, %v1754
        %v1756 = vpop.f32.mrb[0].mxu0
        %v1757 = vadd.f32 %v1268, %v1756
        %v1758 = vpop.f32.mrb[0].mxu0
        %v1759 = vadd.f32 %v1272, %v1758
        %1760 = vmatprep.mubr.bf16.mxu0 0
        %1761 = vmatmul.mubr.bf16.gmra.mrb[0].mxu0 %v1306
        %v1762 = vpop.f32.mrb[0].mxu0
        %v1763 = vadd.f32 %v1268, %v1762
        %v1764 = vpop.f32.mrb[0].mxu0
        %v1765 = vadd.f32 %v1272, %v1764
        %v1766 = vpop.f32.mrb[0].mxu0
        %v1767 = vadd.f32 %v1268, %v1766
        %v1768 = vpop.f32.mrb[0].mxu0
        %v1769 = vadd.f32 %v1272, %v1768
        %1770 = vmatprep.mubr.bf16.mxu0 0
        %1771 = vmatmul.mubr.bf16.gmra.mrb[0].mxu0 %v1307
        %v1772 = vpop.f32.mrb[0].mxu0
        %v1773 = vadd.f32 %v1268, %v1772
        %v1774 = vpop.f32.mrb[0].mxu0
        %v1775 = vadd.f32 %v1272, %v1774
        %v1776 = vpop.f32.mrb[0].mxu0
        %v1777 = vadd.f32 %v1268, %v1776
        %v1778 = vpop.f32.mrb[0].mxu0
        %v1779 = vadd.f32 %v1272, %v1778
        %1780 = vmatprep.mubr.bf16.mxu0 0
        %1781 = vmatmul.mubr.bf16.gmra.mrb[0].mxu0 %v1308
        %v1782 = vpop.f32.mrb[0].mxu0
        %v1783 = vadd.f32 %v1268, %v1782
        %v1784 = vpop.f32.mrb[0].mxu0
        %v1785 = vadd.f32 %v1272, %v1784
        %v1786 = vpop.f32.mrb[0].mxu0
        %v1787 = vadd.f32 %v1268, %v1786
        %v1788 = vpop.f32.mrb[0].mxu0
        %v1789 = vadd.f32 %v1272, %v1788
        %1790 = vmatprep.mubr.bf16.mxu0 0
        %1791 = vmatmul.mubr.bf16.gmra.mrb[0].mxu0 %v1317
        %v1792 = vpop.f32.mrb[0].mxu0
        %v1793 = vadd.f32 %v1268, %v1792
        %v1794 = vpop.f32.mrb[0].mxu0
        %v1795 = vadd.f32 %v1272, %v1794
        %v1796 = vpop.f32.mrb[0].mxu0
        %v1797 = vadd.f32 %v1268, %v1796
        %v1798 = vpop.f32.mrb[0].mxu0
        %v1799 = vadd.f32 %v1272, %v1798
        %1800 = vmatprep.mubr.bf16.mxu0 0
        %1801 = vmatmul.mubr.bf16.gmra.mrb[0].mxu0 %v1318
        %v1802 = vpop.f32.mrb[0].mxu0
        %v1803 = vadd.f32 %v1268, %v1802
        %v1804 = vpop.f32.mrb[0].mxu0
        %v1805 = vadd.f32 %v1272, %v1804
        %v1806 = vpop.f32.mrb[0].mxu0
        %v1807 = vadd.f32 %v1268, %v1806
        %v1808 = vpop.f32.mrb[0].mxu0
        %v1809 = vadd.f32 %v1272, %v1808
        %1810 = vmatprep.mubr.bf16.mxu0 0
        %1811 = vmatmul.mubr.bf16.gmra.mrb[0].mxu0 %v1319
        %v1812 = vpop.f32.mrb[0].mxu0
        %v1813 = vadd.f32 %v1268, %v1812
        %v1814 = vpop.f32.mrb[0].mxu0
        %v1815 = vadd.f32 %v1272, %v1814
        %v1816 = vpop.f32.mrb[0].mxu0
        %v1817 = vadd.f32 %v1268, %v1816
        %v1818 = vpop.f32.mrb[0].mxu0
        %v1819 = vadd.f32 %v1272, %v1818
        %1820 = vmatprep.mubr.bf16.mxu0 0
        %1821 = vmatmul.mubr.bf16.gmra.mrb[0].mxu0 %v1320
        %v1822 = vpop.f32.mrb[0].mxu0
        %v1823 = vadd.f32 %v1268, %v1822
        %v1824 = vpop.f32.mrb[0].mxu0
        %v1825 = vadd.f32 %v1272, %v1824
        %v1826 = vpop.f32.mrb[0].mxu0
        %v1827 = vadd.f32 %v1268, %v1826
        %v1828 = vpop.f32.mrb[0].mxu0
        %v1829 = vadd.f32 %v1272, %v1828
        %1830 = vmatprep.mubr.bf16.mxu0 0
        %1831 = vmatmul.mubr.bf16.gmra.mrb[0].mxu0 %v1321
        %v1832 = vpop.f32.mrb[0].mxu0
        %v1833 = vadd.f32 %v1268, %v1832
        %v1834 = vpop.f32.mrb[0].mxu0
        %v1835 = vadd.f32 %v1272, %v1834
        %v1836 = vpop.f32.mrb[0].mxu0
        %v1837 = vadd.f32 %v1268, %v1836
        %v1838 = vpop.f32.mrb[0].mxu0
        %v1839 = vadd.f32 %v1272, %v1838
        %1840 = vmatprep.mubr.bf16.mxu0 0
        %1841 = vmatmul.mubr.bf16.gmra.mrb[0].mxu0 %v1322
        %v1842 = vpop.f32.mrb[0].mxu0
        %v1843 = vadd.f32 %v1268, %v1842
        %v1844 = vpop.f32.mrb[0].mxu0
        %v1845 = vadd.f32 %v1272, %v1844
        %v1846 = vpop.f32.mrb[0].mxu0
        %v1847 = vadd.f32 %v1268, %v1846
        %v1848 = vpop.f32.mrb[0].mxu0
        %v1849 = vadd.f32 %v1272, %v1848
        %1850 = vmatprep.mubr.bf16.mxu0 0
        %1851 = vmatmul.mubr.bf16.gmra.mrb[0].mxu0 %v1323
        %v1852 = vpop.f32.mrb[0].mxu0
        %v1853 = vadd.f32 %v1268, %v1852
        %v1854 = vpop.f32.mrb[0].mxu0
        %v1855 = vadd.f32 %v1272, %v1854
        %v1856 = vpop.f32.mrb[0].mxu0
        %v1857 = vadd.f32 %v1268, %v1856
        %v1858 = vpop.f32.mrb[0].mxu0
        %v1859 = vadd.f32 %v1272, %v1858
        %1860 = vmatprep.mubr.bf16.mxu0 0
        %1861 = vmatmul.mubr.bf16.gmra.mrb[0].mxu0 %v1324
        %v1862 = vpop.f32.mrb[0].mxu0
        %v1863 = vadd.f32 %v1268, %v1862
        %v1864 = vpop.f32.mrb[0].mxu0
        %v1865 = vadd.f32 %v1272, %v1864
        %v1866 = vpop.f32.mrb[0].mxu0
        %v1867 = vadd.f32 %v1268, %v1866
        %v1868 = vpop.f32.mrb[0].mxu0
        %v1869 = vadd.f32 %v1272, %v1868
        %1870 = vdwg.mxu0
        %v1871 = vpack.c.bf16 %v1364, %v1360
        %v1872 = vpack.c.bf16 %v1366, %v1362
        %v1873 = vpack.c.bf16 %v1637, %v1633
        %v1874 = vpack.c.bf16 %v1639, %v1635
        %v1875 = vpack.c.bf16 %v1374, %v1370
        %v1876 = vpack.c.bf16 %v1376, %v1372
        %v1877 = vpack.c.bf16 %v1647, %v1643
        %v1878 = vpack.c.bf16 %v1649, %v1645
        %v1879 = vpack.c.bf16 %v1384, %v1380
        %v1880 = vpack.c.bf16 %v1386, %v1382
        %v1881 = vpack.c.bf16 %v1657, %v1653
        %v1882 = vpack.c.bf16 %v1659, %v1655
        %v1883 = vpack.c.bf16 %v1394, %v1390
        %v1884 = vpack.c.bf16 %v1396, %v1392
        %v1885 = vpack.c.bf16 %v1667, %v1663
        %v1886 = vpack.c.bf16 %v1669, %v1665
        %v1887 = vpack.c.bf16 %v1404, %v1400
        %v1888 = vpack.c.bf16 %v1406, %v1402
        %v1889 = vpack.c.bf16 %v1677, %v1673
        %v1890 = vpack.c.bf16 %v1679, %v1675
        %v1891 = vpack.c.bf16 %v1414, %v1410
        %v1892 = vpack.c.bf16 %v1416, %v1412
        %v1893 = vpack.c.bf16 %v1687, %v1683
        %v1894 = vpack.c.bf16 %v1689, %v1685
        %v1895 = vpack.c.bf16 %v1424, %v1420
        %v1896 = vpack.c.bf16 %v1426, %v1422
        %v1897 = vpack.c.bf16 %v1697, %v1693
        %v1898 = vpack.c.bf16 %v1699, %v1695
        %v1899 = vpack.c.bf16 %v1434, %v1430
        %v1900 = vpack.c.bf16 %v1436, %v1432
        %v1901 = vpack.c.bf16 %v1707, %v1703
        %v1902 = vpack.c.bf16 %v1709, %v1705
        %v1903 = vpack.c.bf16 %v1444, %v1440
        %v1904 = vpack.c.bf16 %v1446, %v1442
        %v1905 = vpack.c.bf16 %v1717, %v1713
        %v1906 = vpack.c.bf16 %v1719, %v1715
        %v1907 = vpack.c.bf16 %v1454, %v1450
        %v1908 = vpack.c.bf16 %v1456, %v1452
        %v1909 = vpack.c.bf16 %v1727, %v1723
        %v1910 = vpack.c.bf16 %v1729, %v1725
        %v1911 = vpack.c.bf16 %v1464, %v1460
        %v1912 = vpack.c.bf16 %v1466, %v1462
        %v1913 = vpack.c.bf16 %v1737, %v1733
        %v1914 = vpack.c.bf16 %v1739, %v1735
        %v1915 = vpack.c.bf16 %v1474, %v1470
        %v1916 = vpack.c.bf16 %v1476, %v1472
        %v1917 = vpack.c.bf16 %v1747, %v1743
        %v1918 = vpack.c.bf16 %v1749, %v1745
        %v1919 = vpack.c.bf16 %v1484, %v1480
        %v1920 = vpack.c.bf16 %v1486, %v1482
        %v1921 = vpack.c.bf16 %v1757, %v1753
        %v1922 = vpack.c.bf16 %v1759, %v1755
        %v1923 = vpack.c.bf16 %v1494, %v1490
        %v1924 = vpack.c.bf16 %v1496, %v1492
        %v1925 = vpack.c.bf16 %v1767, %v1763
        %v1926 = vpack.c.bf16 %v1769, %v1765
        %v1927 = vpack.c.bf16 %v1504, %v1500
        %v1928 = vpack.c.bf16 %v1506, %v1502
        %v1929 = vpack.c.bf16 %v1777, %v1773
        %v1930 = vpack.c.bf16 %v1779, %v1775
        %v1931 = vpack.c.bf16 %v1514, %v1510
        %v1932 = vpack.c.bf16 %v1516, %v1512
        %v1933 = vpack.c.bf16 %v1787, %v1783
        %v1934 = vpack.c.bf16 %v1789, %v1785
        %v1935 = vpack.c.bf16 %v1524, %v1520
        %v1936 = vpack.c.bf16 %v1526, %v1522
        %v1937 = vpack.c.bf16 %v1797, %v1793
        %v1938 = vpack.c.bf16 %v1799, %v1795
        %v1939 = vpack.c.bf16 %v1534, %v1530
        %v1940 = vpack.c.bf16 %v1536, %v1532
        %v1941 = vpack.c.bf16 %v1807, %v1803
        %v1942 = vpack.c.bf16 %v1809, %v1805
        %v1943 = vpack.c.bf16 %v1544, %v1540
        %v1944 = vpack.c.bf16 %v1546, %v1542
        %v1945 = vpack.c.bf16 %v1817, %v1813
        %v1946 = vpack.c.bf16 %v1819, %v1815
        %v1947 = vpack.c.bf16 %v1554, %v1550
        %v1948 = vpack.c.bf16 %v1556, %v1552
        %v1949 = vpack.c.bf16 %v1827, %v1823
        %v1950 = vpack.c.bf16 %v1829, %v1825
        %v1951 = vpack.c.bf16 %v1564, %v1560
        %v1952 = vpack.c.bf16 %v1566, %v1562
        %v1953 = vpack.c.bf16 %v1837, %v1833
        %v1954 = vpack.c.bf16 %v1839, %v1835
        %v1955 = vpack.c.bf16 %v1574, %v1570
        %v1956 = vpack.c.bf16 %v1576, %v1572
        %v1957 = vpack.c.bf16 %v1847, %v1843
        %v1958 = vpack.c.bf16 %v1849, %v1845
        %v1959 = vpack.c.bf16 %v1584, %v1580
        %v1960 = vpack.c.bf16 %v1586, %v1582
        %v1961 = vpack.c.bf16 %v1857, %v1853
        %v1962 = vpack.c.bf16 %v1859, %v1855
        %v1963 = vpack.c.bf16 %v1594, %v1590
        %v1964 = vpack.c.bf16 %v1596, %v1592
        %v1965 = vpack.c.bf16 %v1867, %v1863
        %v1966 = vpack.c.bf16 %v1869, %v1865
        %v2063 = vunpack.c.l.b16 %v1871
        %v2064 = vunpack.c.l.b16 %v1872
        %v2065 = vunpack.c.l.b16 %v1873
        %v2066 = vunpack.c.l.b16 %v1874
        %v2067 = vunpack.c.h.b16 %v1871
        %v2068 = vunpack.c.h.b16 %v1872
        %v2069 = vunpack.c.h.b16 %v1873
        %v2070 = vunpack.c.h.b16 %v1874
        %v2071 = vunpack.c.l.b16 %v1875
        %v2072 = vunpack.c.l.b16 %v1876
        %v2073 = vunpack.c.l.b16 %v1877
        %v2074 = vunpack.c.l.b16 %v1878
        %v2075 = vunpack.c.h.b16 %v1875
        %v2076 = vunpack.c.h.b16 %v1876
        %v2077 = vunpack.c.h.b16 %v1877
        %v2078 = vunpack.c.h.b16 %v1878
        %v2079 = vunpack.c.l.b16 %v1879
        %v2080 = vunpack.c.l.b16 %v1880
        %v2081 = vunpack.c.l.b16 %v1881
        %v2082 = vunpack.c.l.b16 %v1882
        %v2083 = vunpack.c.h.b16 %v1879
        %v2084 = vunpack.c.h.b16 %v1880
        %v2085 = vunpack.c.h.b16 %v1881
        %v2086 = vunpack.c.h.b16 %v1882
        %v2087 = vunpack.c.l.b16 %v1883
        %v2088 = vunpack.c.l.b16 %v1884
        %v2089 = vunpack.c.l.b16 %v1885
        %v2090 = vunpack.c.l.b16 %v1886
        %v2091 = vunpack.c.h.b16 %v1883
        %v2092 = vunpack.c.h.b16 %v1884
        %v2093 = vunpack.c.h.b16 %v1885
        %v2094 = vunpack.c.h.b16 %v1886
        %v2095 = vunpack.c.l.b16 %v1887
        %v2096 = vunpack.c.l.b16 %v1888
        %v2097 = vunpack.c.l.b16 %v1889
        %v2098 = vunpack.c.l.b16 %v1890
        %v2099 = vunpack.c.h.b16 %v1887
        %v2100 = vunpack.c.h.b16 %v1888
        %v2101 = vunpack.c.h.b16 %v1889
        %v2102 = vunpack.c.h.b16 %v1890
        %v2103 = vunpack.c.l.b16 %v1891
        %v2104 = vunpack.c.l.b16 %v1892
        %v2105 = vunpack.c.l.b16 %v1893
        %v2106 = vunpack.c.l.b16 %v1894
        %v2107 = vunpack.c.h.b16 %v1891
        %v2108 = vunpack.c.h.b16 %v1892
        %v2109 = vunpack.c.h.b16 %v1893
        %v2110 = vunpack.c.h.b16 %v1894
        %v2111 = vunpack.c.l.b16 %v1895
        %v2112 = vunpack.c.l.b16 %v1896
        %v2113 = vunpack.c.l.b16 %v1897
        %v2114 = vunpack.c.l.b16 %v1898
        %v2115 = vunpack.c.h.b16 %v1895
        %v2116 = vunpack.c.h.b16 %v1896
        %v2117 = vunpack.c.h.b16 %v1897
        %v2118 = vunpack.c.h.b16 %v1898
        %v2119 = vunpack.c.l.b16 %v1899
        %v2120 = vunpack.c.l.b16 %v1900
        %v2121 = vunpack.c.l.b16 %v1901
        %v2122 = vunpack.c.l.b16 %v1902
        %v2123 = vunpack.c.h.b16 %v1899
        %v2124 = vunpack.c.h.b16 %v1900
        %v2125 = vunpack.c.h.b16 %v1901
        %v2126 = vunpack.c.h.b16 %v1902
        %v2127 = vunpack.c.l.b16 %v1903
        %v2128 = vunpack.c.l.b16 %v1904
        %v2129 = vunpack.c.l.b16 %v1905
        %v2130 = vunpack.c.l.b16 %v1906
        %v2131 = vunpack.c.h.b16 %v1903
        %v2132 = vunpack.c.h.b16 %v1904
        %v2133 = vunpack.c.h.b16 %v1905
        %v2134 = vunpack.c.h.b16 %v1906
        %v2135 = vunpack.c.l.b16 %v1907
        %v2136 = vunpack.c.l.b16 %v1908
        %v2137 = vunpack.c.l.b16 %v1909
        %v2138 = vunpack.c.l.b16 %v1910
        %v2139 = vunpack.c.h.b16 %v1907
        %v2140 = vunpack.c.h.b16 %v1908
        %v2141 = vunpack.c.h.b16 %v1909
        %v2142 = vunpack.c.h.b16 %v1910
        %v2143 = vunpack.c.l.b16 %v1911
        %v2144 = vunpack.c.l.b16 %v1912
        %v2145 = vunpack.c.l.b16 %v1913
        %v2146 = vunpack.c.l.b16 %v1914
        %v2147 = vunpack.c.h.b16 %v1911
        %v2148 = vunpack.c.h.b16 %v1912
        %v2149 = vunpack.c.h.b16 %v1913
        %v2150 = vunpack.c.h.b16 %v1914
        %v2151 = vunpack.c.l.b16 %v1915
        %v2152 = vunpack.c.l.b16 %v1916
        %v2153 = vunpack.c.l.b16 %v1917
        %v2154 = vunpack.c.l.b16 %v1918
        %v2155 = vunpack.c.h.b16 %v1915
        %v2156 = vunpack.c.h.b16 %v1916
        %v2157 = vunpack.c.h.b16 %v1917
        %v2158 = vunpack.c.h.b16 %v1918
        %v2159 = vunpack.c.l.b16 %v1919
        %v2160 = vunpack.c.l.b16 %v1920
        %v2161 = vunpack.c.l.b16 %v1921
        %v2162 = vunpack.c.l.b16 %v1922
        %v2163 = vunpack.c.h.b16 %v1919
        %v2164 = vunpack.c.h.b16 %v1920
        %v2165 = vunpack.c.h.b16 %v1921
        %v2166 = vunpack.c.h.b16 %v1922
        %v2167 = vunpack.c.l.b16 %v1923
        %v2168 = vunpack.c.l.b16 %v1924
        %v2169 = vunpack.c.l.b16 %v1925
        %v2170 = vunpack.c.l.b16 %v1926
        %v2171 = vunpack.c.h.b16 %v1923
        %v2172 = vunpack.c.h.b16 %v1924
        %v2173 = vunpack.c.h.b16 %v1925
        %v2174 = vunpack.c.h.b16 %v1926
        %v2175 = vunpack.c.l.b16 %v1927
        %v2176 = vunpack.c.l.b16 %v1928
        %v2177 = vunpack.c.l.b16 %v1929
        %v2178 = vunpack.c.l.b16 %v1930
        %v2179 = vunpack.c.h.b16 %v1927
        %v2180 = vunpack.c.h.b16 %v1928
        %v2181 = vunpack.c.h.b16 %v1929
        %v2182 = vunpack.c.h.b16 %v1930
        %v2183 = vunpack.c.l.b16 %v1931
        %v2184 = vunpack.c.l.b16 %v1932
        %v2185 = vunpack.c.l.b16 %v1933
        %v2186 = vunpack.c.l.b16 %v1934
        %v2187 = vunpack.c.h.b16 %v1931
        %v2188 = vunpack.c.h.b16 %v1932
        %v2189 = vunpack.c.h.b16 %v1933
        %v2190 = vunpack.c.h.b16 %v1934
        %v2191 = vunpack.c.l.b16 %v1935
        %v2192 = vunpack.c.l.b16 %v1936
        %v2193 = vunpack.c.l.b16 %v1937
        %v2194 = vunpack.c.l.b16 %v1938
        %v2195 = vunpack.c.h.b16 %v1935
        %v2196 = vunpack.c.h.b16 %v1936
        %v2197 = vunpack.c.h.b16 %v1937
        %v2198 = vunpack.c.h.b16 %v1938
        %v2199 = vunpack.c.l.b16 %v1939
        %v2200 = vunpack.c.l.b16 %v1940
        %v2201 = vunpack.c.l.b16 %v1941
        %v2202 = vunpack.c.l.b16 %v1942
        %v2203 = vunpack.c.h.b16 %v1939
        %v2204 = vunpack.c.h.b16 %v1940
        %v2205 = vunpack.c.h.b16 %v1941
        %v2206 = vunpack.c.h.b16 %v1942
        %v2207 = vunpack.c.l.b16 %v1943
        %v2208 = vunpack.c.l.b16 %v1944
        %v2209 = vunpack.c.l.b16 %v1945
        %v2210 = vunpack.c.l.b16 %v1946
        %v2211 = vunpack.c.h.b16 %v1943
        %v2212 = vunpack.c.h.b16 %v1944
        %v2213 = vunpack.c.h.b16 %v1945
        %v2214 = vunpack.c.h.b16 %v1946
        %v2215 = vunpack.c.l.b16 %v1947
        %v2216 = vunpack.c.l.b16 %v1948
        %v2217 = vunpack.c.l.b16 %v1949
        %v2218 = vunpack.c.l.b16 %v1950
        %v2219 = vunpack.c.h.b16 %v1947
        %v2220 = vunpack.c.h.b16 %v1948
        %v2221 = vunpack.c.h.b16 %v1949
        %v2222 = vunpack.c.h.b16 %v1950
        %v2223 = vunpack.c.l.b16 %v1951
        %v2224 = vunpack.c.l.b16 %v1952
        %v2225 = vunpack.c.l.b16 %v1953
        %v2226 = vunpack.c.l.b16 %v1954
        %v2227 = vunpack.c.h.b16 %v1951
        %v2228 = vunpack.c.h.b16 %v1952
        %v2229 = vunpack.c.h.b16 %v1953
        %v2230 = vunpack.c.h.b16 %v1954
        %v2231 = vunpack.c.l.b16 %v1955
        %v2232 = vunpack.c.l.b16 %v1956
        %v2233 = vunpack.c.l.b16 %v1957
        %v2234 = vunpack.c.l.b16 %v1958
        %v2235 = vunpack.c.h.b16 %v1955
        %v2236 = vunpack.c.h.b16 %v1956
        %v2237 = vunpack.c.h.b16 %v1957
        %v2238 = vunpack.c.h.b16 %v1958
        %v2239 = vunpack.c.l.b16 %v1959
        %v2240 = vunpack.c.l.b16 %v1960
        %v2241 = vunpack.c.l.b16 %v1961
        %v2242 = vunpack.c.l.b16 %v1962
        %v2243 = vunpack.c.h.b16 %v1959
        %v2244 = vunpack.c.h.b16 %v1960
        %v2245 = vunpack.c.h.b16 %v1961
        %v2246 = vunpack.c.h.b16 %v1962
        %v2247 = vunpack.c.l.b16 %v1963
        %v2248 = vunpack.c.l.b16 %v1964
        %v2249 = vunpack.c.l.b16 %v1965
        %v2250 = vunpack.c.l.b16 %v1966
        %v2251 = vunpack.c.h.b16 %v1963
        %v2252 = vunpack.c.h.b16 %v1964
        %v2253 = vunpack.c.h.b16 %v1965
        %v2254 = vunpack.c.h.b16 %v1966
        %v2255 = vpack.c.b16 %v2064, %v2063
        %v2256 = vpack.c.b16 %v2066, %v2065
        %v2257 = vpack.c.b16 %v2068, %v2067
        %v2258 = vpack.c.b16 %v2070, %v2069
        %v2259 = vpack.c.b16 %v2072, %v2071
        %v2260 = vpack.c.b16 %v2074, %v2073
        %v2261 = vpack.c.b16 %v2076, %v2075
        %v2262 = vpack.c.b16 %v2078, %v2077
        %v2263 = vpack.c.b16 %v2080, %v2079
        %v2264 = vpack.c.b16 %v2082, %v2081
        %v2265 = vpack.c.b16 %v2084, %v2083
        %v2266 = vpack.c.b16 %v2086, %v2085
        %v2267 = vpack.c.b16 %v2088, %v2087
        %v2268 = vpack.c.b16 %v2090, %v2089
        %v2269 = vpack.c.b16 %v2092, %v2091
        %v2270 = vpack.c.b16 %v2094, %v2093
        %v2271 = vpack.c.b16 %v2096, %v2095
        %v2272 = vpack.c.b16 %v2098, %v2097
        %v2273 = vpack.c.b16 %v2100, %v2099
        %v2274 = vpack.c.b16 %v2102, %v2101
        %v2275 = vpack.c.b16 %v2104, %v2103
        %v2276 = vpack.c.b16 %v2106, %v2105
        %v2277 = vpack.c.b16 %v2108, %v2107
        %v2278 = vpack.c.b16 %v2110, %v2109
        %v2279 = vpack.c.b16 %v2112, %v2111
        %v2280 = vpack.c.b16 %v2114, %v2113
        %v2281 = vpack.c.b16 %v2116, %v2115
        %v2282 = vpack.c.b16 %v2118, %v2117
        %v2283 = vpack.c.b16 %v2120, %v2119
        %v2284 = vpack.c.b16 %v2122, %v2121
        %v2285 = vpack.c.b16 %v2124, %v2123
        %v2286 = vpack.c.b16 %v2126, %v2125
        %v2287 = vpack.c.b16 %v2128, %v2127
        %v2288 = vpack.c.b16 %v2130, %v2129
        %v2289 = vpack.c.b16 %v2132, %v2131
        %v2290 = vpack.c.b16 %v2134, %v2133
        %v2291 = vpack.c.b16 %v2136, %v2135
        %v2292 = vpack.c.b16 %v2138, %v2137
        %v2293 = vpack.c.b16 %v2140, %v2139
        %v2294 = vpack.c.b16 %v2142, %v2141
        %v2295 = vpack.c.b16 %v2144, %v2143
        %v2296 = vpack.c.b16 %v2146, %v2145
        %v2297 = vpack.c.b16 %v2148, %v2147
        %v2298 = vpack.c.b16 %v2150, %v2149
        %v2299 = vpack.c.b16 %v2152, %v2151
        %v2300 = vpack.c.b16 %v2154, %v2153
        %v2301 = vpack.c.b16 %v2156, %v2155
        %v2302 = vpack.c.b16 %v2158, %v2157
        %v2303 = vpack.c.b16 %v2160, %v2159
        %v2304 = vpack.c.b16 %v2162, %v2161
        %v2305 = vpack.c.b16 %v2164, %v2163
        %v2306 = vpack.c.b16 %v2166, %v2165
        %v2307 = vpack.c.b16 %v2168, %v2167
        %v2308 = vpack.c.b16 %v2170, %v2169
        %v2309 = vpack.c.b16 %v2172, %v2171
        %v2310 = vpack.c.b16 %v2174, %v2173
        %v2311 = vpack.c.b16 %v2176, %v2175
        %v2312 = vpack.c.b16 %v2178, %v2177
        %v2313 = vpack.c.b16 %v2180, %v2179
        %v2314 = vpack.c.b16 %v2182, %v2181
        %v2315 = vpack.c.b16 %v2184, %v2183
        %v2316 = vpack.c.b16 %v2186, %v2185
        %v2317 = vpack.c.b16 %v2188, %v2187
        %v2318 = vpack.c.b16 %v2190, %v2189
        %v2319 = vpack.c.b16 %v2192, %v2191
        %v2320 = vpack.c.b16 %v2194, %v2193
        %v2321 = vpack.c.b16 %v2196, %v2195
        %v2322 = vpack.c.b16 %v2198, %v2197
        %v2323 = vpack.c.b16 %v2200, %v2199
        %v2324 = vpack.c.b16 %v2202, %v2201
        %v2325 = vpack.c.b16 %v2204, %v2203
        %v2326 = vpack.c.b16 %v2206, %v2205
        %v2327 = vpack.c.b16 %v2208, %v2207
        %v2328 = vpack.c.b16 %v2210, %v2209
        %v2329 = vpack.c.b16 %v2212, %v2211
        %v2330 = vpack.c.b16 %v2214, %v2213
        %v2331 = vpack.c.b16 %v2216, %v2215
        %v2332 = vpack.c.b16 %v2218, %v2217
        %v2333 = vpack.c.b16 %v2220, %v2219
        %v2334 = vpack.c.b16 %v2222, %v2221
        %v2335 = vpack.c.b16 %v2224, %v2223
        %v2336 = vpack.c.b16 %v2226, %v2225
        %v2337 = vpack.c.b16 %v2228, %v2227
        %v2338 = vpack.c.b16 %v2230, %v2229
        %v2339 = vpack.c.b16 %v2232, %v2231
        %v2340 = vpack.c.b16 %v2234, %v2233
        %v2341 = vpack.c.b16 %v2236, %v2235
        %v2342 = vpack.c.b16 %v2238, %v2237
        %v2343 = vpack.c.b16 %v2240, %v2239
        %v2344 = vpack.c.b16 %v2242, %v2241
        %v2345 = vpack.c.b16 %v2244, %v2243
        %v2346 = vpack.c.b16 %v2246, %v2245
        %v2347 = vpack.c.b16 %v2248, %v2247
        %v2348 = vpack.c.b16 %v2250, %v2249
        %v2349 = vpack.c.b16 %v2252, %v2251
        %v2350 = vpack.c.b16 %v2254, %v2253
        %2447 = vst [vmem:[%s178] sm:$0xff] %v2255
        %2448 = vst [vmem:[%s178 + $0x8] sm:$0xff] %v2256
        %2449 = vst [vmem:[%s178 + $0x10] sm:$0xff] %v2257
        %2450 = vst [vmem:[%s178 + $0x18] sm:$0xff] %v2258
        %2451 = vst [vmem:[%s178 + $0x20] sm:$0xff] %v2259
        %2452 = vst [vmem:[%s178 + $0x28] sm:$0xff] %v2260
        %2453 = vst [vmem:[%s178 + $0x30] sm:$0xff] %v2261
        %2454 = vst [vmem:[%s178 + $0x38] sm:$0xff] %v2262
        %2455 = vst [vmem:[%s178 + $0x40] sm:$0xff] %v2263
        %2456 = vst [vmem:[%s178 + $0x48] sm:$0xff] %v2264
        %2457 = vst [vmem:[%s178 + $0x50] sm:$0xff] %v2265
        %2458 = vst [vmem:[%s178 + $0x58] sm:$0xff] %v2266
        %2459 = vst [vmem:[%s178 + $0x60] sm:$0xff] %v2267
        %2460 = vst [vmem:[%s178 + $0x68] sm:$0xff] %v2268
        %2461 = vst [vmem:[%s178 + $0x70] sm:$0xff] %v2269
        %2462 = vst [vmem:[%s178 + $0x78] sm:$0xff] %v2270
        %2463 = vst [vmem:[%s178 + $0x80] sm:$0xff] %v2271
        %2464 = vst [vmem:[%s178 + $0x88] sm:$0xff] %v2272
        %2465 = vst [vmem:[%s178 + $0x90] sm:$0xff] %v2273
        %2466 = vst [vmem:[%s178 + $0x98] sm:$0xff] %v2274
        %2467 = vst [vmem:[%s178 + $0xa0] sm:$0xff] %v2275
        %2468 = vst [vmem:[%s178 + $0xa8] sm:$0xff] %v2276
        %2469 = vst [vmem:[%s178 + $0xb0] sm:$0xff] %v2277
        %2470 = vst [vmem:[%s178 + $0xb8] sm:$0xff] %v2278
        %2471 = vst [vmem:[%s178 + $0xc0] sm:$0xff] %v2279
        %2472 = vst [vmem:[%s178 + $0xc8] sm:$0xff] %v2280
        %2473 = vst [vmem:[%s178 + $0xd0] sm:$0xff] %v2281
        %2474 = vst [vmem:[%s178 + $0xd8] sm:$0xff] %v2282
        %2475 = vst [vmem:[%s178 + $0xe0] sm:$0xff] %v2283
        %2476 = vst [vmem:[%s178 + $0xe8] sm:$0xff] %v2284
        %2477 = vst [vmem:[%s178 + $0xf0] sm:$0xff] %v2285
        %2478 = vst [vmem:[%s178 + $0xf8] sm:$0xff] %v2286
        %2479 = vst [vmem:[%s178 + $0x100] sm:$0xff] %v2287
        %2480 = vst [vmem:[%s178 + $0x108] sm:$0xff] %v2288
        %2481 = vst [vmem:[%s178 + $0x110] sm:$0xff] %v2289
        %2482 = vst [vmem:[%s178 + $0x118] sm:$0xff] %v2290
        %2483 = vst [vmem:[%s178 + $0x120] sm:$0xff] %v2291
        %2484 = vst [vmem:[%s178 + $0x128] sm:$0xff] %v2292
        %2485 = vst [vmem:[%s178 + $0x130] sm:$0xff] %v2293
        %2486 = vst [vmem:[%s178 + $0x138] sm:$0xff] %v2294
        %2487 = vst [vmem:[%s178 + $0x140] sm:$0xff] %v2295
        %2488 = vst [vmem:[%s178 + $0x148] sm:$0xff] %v2296
        %2489 = vst [vmem:[%s178 + $0x150] sm:$0xff] %v2297
        %2490 = vst [vmem:[%s178 + $0x158] sm:$0xff] %v2298
        %2491 = vst [vmem:[%s178 + $0x160] sm:$0xff] %v2299
        %2492 = vst [vmem:[%s178 + $0x168] sm:$0xff] %v2300
        %2493 = vst [vmem:[%s178 + $0x170] sm:$0xff] %v2301
        %2494 = vst [vmem:[%s178 + $0x178] sm:$0xff] %v2302
        %2495 = vst [vmem:[%s178 + $0x180] sm:$0xff] %v2303
        %2496 = vst [vmem:[%s178 + $0x188] sm:$0xff] %v2304
        %2497 = vst [vmem:[%s178 + $0x190] sm:$0xff] %v2305
        %2498 = vst [vmem:[%s178 + $0x198] sm:$0xff] %v2306
        %2499 = vst [vmem:[%s178 + $0x1a0] sm:$0xff] %v2307
        %2500 = vst [vmem:[%s178 + $0x1a8] sm:$0xff] %v2308
        %2501 = vst [vmem:[%s178 + $0x1b0] sm:$0xff] %v2309
        %2502 = vst [vmem:[%s178 + $0x1b8] sm:$0xff] %v2310
        %2503 = vst [vmem:[%s178 + $0x1c0] sm:$0xff] %v2311
        %2504 = vst [vmem:[%s178 + $0x1c8] sm:$0xff] %v2312
        %2505 = vst [vmem:[%s178 + $0x1d0] sm:$0xff] %v2313
        %2506 = vst [vmem:[%s178 + $0x1d8] sm:$0xff] %v2314
        %2507 = vst [vmem:[%s178 + $0x1e0] sm:$0xff] %v2315
        %2508 = vst [vmem:[%s178 + $0x1e8] sm:$0xff] %v2316
        %2509 = vst [vmem:[%s178 + $0x1f0] sm:$0xff] %v2317
        %2510 = vst [vmem:[%s178 + $0x1f8] sm:$0xff] %v2318
        %2511 = vst [vmem:[%s178 + $0x200] sm:$0xff] %v2319
        %2512 = vst [vmem:[%s178 + $0x208] sm:$0xff] %v2320
        %2513 = vst [vmem:[%s178 + $0x210] sm:$0xff] %v2321
        %2514 = vst [vmem:[%s178 + $0x218] sm:$0xff] %v2322
        %2515 = vst [vmem:[%s178 + $0x220] sm:$0xff] %v2323
        %2516 = vst [vmem:[%s178 + $0x228] sm:$0xff] %v2324
        %2517 = vst [vmem:[%s178 + $0x230] sm:$0xff] %v2325
        %2518 = vst [vmem:[%s178 + $0x238] sm:$0xff] %v2326
        %2519 = vst [vmem:[%s178 + $0x240] sm:$0xff] %v2327
        %2520 = vst [vmem:[%s178 + $0x248] sm:$0xff] %v2328
        %2521 = vst [vmem:[%s178 + $0x250] sm:$0xff] %v2329
        %2522 = vst [vmem:[%s178 + $0x258] sm:$0xff] %v2330
        %2523 = vst [vmem:[%s178 + $0x260] sm:$0xff] %v2331
        %2524 = vst [vmem:[%s178 + $0x268] sm:$0xff] %v2332
        %2525 = vst [vmem:[%s178 + $0x270] sm:$0xff] %v2333
        %2526 = vst [vmem:[%s178 + $0x278] sm:$0xff] %v2334
        %2527 = vst [vmem:[%s178 + $0x280] sm:$0xff] %v2335
        %2528 = vst [vmem:[%s178 + $0x288] sm:$0xff] %v2336
        %2529 = vst [vmem:[%s178 + $0x290] sm:$0xff] %v2337
        %2530 = vst [vmem:[%s178 + $0x298] sm:$0xff] %v2338
        %2531 = vst [vmem:[%s178 + $0x2a0] sm:$0xff] %v2339
        %2532 = vst [vmem:[%s178 + $0x2a8] sm:$0xff] %v2340
        %2533 = vst [vmem:[%s178 + $0x2b0] sm:$0xff] %v2341
        %2534 = vst [vmem:[%s178 + $0x2b8] sm:$0xff] %v2342
        %2535 = vst [vmem:[%s178 + $0x2c0] sm:$0xff] %v2343
        %2536 = vst [vmem:[%s178 + $0x2c8] sm:$0xff] %v2344
        %2537 = vst [vmem:[%s178 + $0x2d0] sm:$0xff] %v2345
        %2538 = vst [vmem:[%s178 + $0x2d8] sm:$0xff] %v2346
        %2539 = vst [vmem:[%s178 + $0x2e0] sm:$0xff] %v2347
        %2540 = vst [vmem:[%s178 + $0x2e8] sm:$0xff] %v2348
        %2541 = vst [vmem:[%s178 + $0x2f0] sm:$0xff] %v2349
        %2542 = vst [vmem:[%s178 + $0x2f8] sm:$0xff] %v2350
        %s2543 = sand.u32 %s94, 1
        %s2544 = scalar_lea.sflag [#allocation4], %s2543
        %s2545 = sand.u32 %s94, 1
        %s2546 = smul.addr %s2545, 768
        %s2547 = scalar_lea.vmem [#allocation5], %s2546
        // Predicated region
        $region37: #{tpu_custom_call.1} parent=31 // pred_check
          %p2548 = pneg %p104
        $region38: #{tpu_custom_call.1} parent=31 // pred_check_branch
          %2550 = sbr.rel (%p2548) target = $region40
        $region39: #{tpu_custom_call.1} parent=31 // pred_region
          %s2552 = ssub.s32 12288, 12288
          %2553 = vsyncadd %s2544, %s2552
          %s2554 = smul.addr %s18, 192
          %s2555 = smul.addr %s2554, 64
          %s2556 = scalar_lea.hbm %s3, %s2555
          %s2557 = sshll.u32 %s2547, 4
          %s2558 = int_to_ptr.vmem [resolvable:$true] %s2557
          %2563 = dma.vmem_to_hbm [thread:$0]  %s2558, 12288, %s2556, %s2544, 256, 256, 16
        $region40: #{tpu_custom_call.1} parent=31 // pred_fallthru
          _
      $region32: #{tpu_custom_call.1} parent=5 // pred_fallthru
        _
      %p2564 = scmp.le.s32.totalorder 2, %s13
      // Predicated region
      $region41: #{tpu_custom_call.1} parent=5 // pred_check
        %p2565 = pneg %p2564
      $region42: #{tpu_custom_call.1} parent=5 // pred_check_branch
        %2567 = sbr.rel (%p2565) target = $region44
      $region43: #{tpu_custom_call.1} parent=5 // pred_region
        %s2568 = ssub.s32 %s13, 2
        // Predicated region
        $region45: #{tpu_custom_call.1} parent=43 // pred_check
          %p2569 = pneg %p110
        $region46: #{tpu_custom_call.1} parent=43 // pred_check_branch
          %2571 = sbr.rel (%p2569) target = $region48
        $region47: #{tpu_custom_call.1} parent=43 // pred_region
          %s2572 = sand.u32 %s95, 1
          %s2573 = scalar_lea.sflag [#allocation4], %s2572
          %s2574 = sand.u32 %s95, 1
          %s2575 = smul.addr %s2574, 768
          %s2576 = scalar_lea.vmem [#allocation5], %s2575
          %2577 = dma.done %s2573, 12288
        $region48: #{tpu_custom_call.1} parent=43 // pred_fallthru
          _
      $region44: #{tpu_custom_call.1} parent=5 // pred_fallthru
        _
    $region6: #{tpu_custom_call.1} parent=1 // loop_footer
      %s17 = sadd.s32 1, %s13
    $region7: #{tpu_custom_call.1} parent=1 // loop_footer_branch
      %12 = sbr.rel target = $region3
    $region8: #{tpu_custom_call.1} parent=1 // loop_exit
      _
    %2578 = vsyncpa [#allocation3], 1
    %s2579 = scalar_lea.sflag [#allocation3], 1
    %2580 = vsyncpa %s2579, 1
    %2581 = vsyncpa [#allocation4], 1
    %s2582 = scalar_lea.sflag [#allocation4], 1
    %2583 = vsyncpa %s2582, 1

</llo_original>
